<compile_context>
chip_gen: v7x
topology: tpu7x:2x2x1
jax: 0.10.0
libtpu: 0.0.40
codegen_flags: <defaults>
</compile_context>

<pallas_src>
import jax
import jax.numpy as jnp
from jax.experimental import pallas as pl
from jax.experimental.pallas import tpu as pltpu


# ------------------------------ helpers --------------------------------------
def _round_up(n, m):
    return ((n + m - 1) // m) * m


def _cdiv(a, b):
    return (a + b - 1) // b


def _tpu_generation():
    """Best-effort TPU generation string: 'v2'..'v7' or None."""
    try:
        kind = jax.devices()[0].device_kind.lower()
    except Exception:
        return None
    for g in ("v7", "v6", "v5", "v4", "v3", "v2"):
        if g in kind:
            return g
    return None


def _is_narrow_mxu(gen):
    # 128-wide MXU generations (v5e and older) -> un-fuse the block-diag W2.
    return gen in ("v2", "v3", "v4", "v5")


# ----------------------------- Pallas kernels --------------------------------
def _qnet_kernel_fused_w2(
    x_ref,    # (TILE_B, state_dim)   f32
    a_ref,    # (TILE_B, 1)           f32
    w1x_ref,  # (state_dim, 2048)     bf16  (both heads concat on lanes)
    w1a_ref,  # (1, 2048)             f32   (the `action` row of W1)
    b1_ref,   # (1, 2048)             f32
    w2_ref,   # (2048, 256)           bf16  (block-diagonal)
    b2_ref,   # (1, 256)              f32
    w3_ref,   # (2, 128)              f32   (row i = head i output weights)
    b3_ref,   # (1, 2)                f32
    out_ref,  # (TILE_B, 2)           f32   [:,0]=q1, [:,1]=q2
):
    hd2 = w3_ref.shape[1]
    x = x_ref[...]
    a = a_ref[...]

    # Layer 1 (both heads fused on lanes; action folded as rank-1 VPU update).
    h = jnp.dot(x.astype(jnp.bfloat16), w1x_ref[...],
                preferred_element_type=jnp.float32)
    h = jnp.maximum(h + a * w1a_ref[...] + b1_ref[...], 0.0)

    # Layer 2 (block-diagonal, one matmul on 256-wide MXU chips).
    g = jnp.dot(h.astype(jnp.bfloat16), w2_ref[...],
                preferred_element_type=jnp.float32) + b2_ref[...]
    g = jnp.maximum(g, 0.0)

    # Layer 3 on VPU/XLU (N=1 per head -> skip the MXU weight-tile pass).
    q1 = jnp.sum(g[:, :hd2] * w3_ref[0:1, :], axis=-1, keepdims=True)
    q2 = jnp.sum(g[:, hd2:] * w3_ref[1:2, :], axis=-1, keepdims=True)
    out_ref[...] = jnp.concatenate([q1, q2], axis=1) + b3_ref[...]


def _qnet_kernel_split_w2(
    x_ref,    # (TILE_B, state_dim)   f32
    a_ref,    # (TILE_B, 1)           f32
    w1x_ref,  # (state_dim, 2048)     bf16
    w1a_ref,  # (1, 2048)             f32
    b1_ref,   # (1, 2048)             f32
    w2_ref,   # (2, 1024, 128)        bf16  (per-head dense, no zero blocks)
    b2_ref,   # (1, 256)              f32
    w3_ref,   # (2, 128)              f32
    b3_ref,   # (1, 2)                f32
    out_ref,  # (TILE_B, 2)           f32
):
    hd1 = w1x_ref.shape[1] // 2
    hd2 = w3_ref.shape[1]
    x = x_ref[...]
    a = a_ref[...]

    h = jnp.dot(x.astype(jnp.bfloat16), w1x_ref[...],
                preferred_element_type=jnp.float32)
    h = jnp.maximum(h + a * w1a_ref[...] + b1_ref[...], 0.0)
    hb = h.astype(jnp.bfloat16)

    # Layer 2: two per-head dense matmuls (halves MXU passes on 128-wide MXU).
    g1 = jnp.dot(hb[:, :hd1], w2_ref[0],
                 preferred_element_type=jnp.float32) + b2_ref[:, :hd2]
    g2 = jnp.dot(hb[:, hd1:], w2_ref[1],
                 preferred_element_type=jnp.float32) + b2_ref[:, hd2:]
    g1 = jnp.maximum(g1, 0.0)
    g2 = jnp.maximum(g2, 0.0)

    # Layer 3 on VPU/XLU.
    q1 = jnp.sum(g1 * w3_ref[0:1, :], axis=-1, keepdims=True)
    q2 = jnp.sum(g2 * w3_ref[1:2, :], axis=-1, keepdims=True)
    out_ref[...] = jnp.concatenate([q1, q2], axis=1) + b3_ref[...]


# ------------------------------ Host wrapper ----------------------------------
def _choose_tiling(B, gen, tile_b_max=None):
    """Pick (tile_b, n_tiles): large tiles, near-full last tile, 2-TC aware."""
    if tile_b_max is None:
        tile_b_max = 512 if _is_narrow_mxu(gen) else 1024
    n_tiles = _cdiv(B, tile_b_max)
    if gen == "v7":
        # Make sure both TensorCores get work (and balanced: even tile count).
        if B >= 16:
            n_tiles = max(n_tiles, 2)
        if n_tiles > 1 and n_tiles % 2 == 1:
            n_tiles += 1
    # Near-full tiles (minimal padding waste), sublane-aligned.
    tb = _round_up(_cdiv(B, n_tiles), 8)
    return tb, n_tiles


def qnetwork_forward(x, action, fused, *, tile_b=None):
    """x: (B, state_dim) f32, action: (B, 1) f32, fused: dict from fuse_params.

    Returns (q1, q2), each (B, 1) f32.
    """
    x = x.astype(jnp.float32)
    action = action.astype(jnp.float32)
    B, state_dim = x.shape

    gen = _tpu_generation()
    tb, n_tiles = _choose_tiling(B, gen, tile_b)
    b_pad = tb * n_tiles
    if b_pad != B:
        x = jnp.pad(x, ((0, b_pad - B), (0, 0)))
        action = jnp.pad(action, ((0, b_pad - B), (0, 0)))

    split_w2 = "w2s" in fused
    kernel = _qnet_kernel_split_w2 if split_w2 else _qnet_kernel_fused_w2
    w2 = fused["w2s"] if split_w2 else fused["w2"]
    w2_index_map = (lambda i: (0, 0, 0)) if split_w2 else (lambda i: (0, 0))

    const = lambda i: (0, 0)      # weights: same block every step -> VMEM resident
    batched = lambda i: (i, 0)    # activations / output: stream over batch tiles

    vmem_limit = (32 << 20) if _is_narrow_mxu(gen) else (48 << 20)

    out = pl.pallas_call(
        kernel,
        out_shape=jax.ShapeDtypeStruct((b_pad, 2), jnp.float32),
        grid=(n_tiles,),
        in_specs=[
            pl.BlockSpec((tb, state_dim), batched),            # x
            pl.BlockSpec((tb, 1), batched),                    # action
            pl.BlockSpec(fused["w1x"].shape, const),           # w1x (bf16)
            pl.BlockSpec(fused["w1a"].shape, const),           # w1 action row
            pl.BlockSpec(fused["b1"].shape, const),            # b1
            pl.BlockSpec(w2.shape, w2_index_map),              # w2 (bf16)
            pl.BlockSpec(fused["b2"].shape, const),            # b2
            pl.BlockSpec(fused["w3"].shape, const),            # w3 rows (f32)
            pl.BlockSpec(fused["b3"].shape, const),            # b3
        ],
        out_specs=pl.BlockSpec((tb, 2), batched),
        compiler_params=pltpu.CompilerParams(
            dimension_semantics=("parallel",),
            vmem_limit_bytes=vmem_limit),
    )(x, action, fused["w1x"], fused["w1a"], fused["b1"],
      w2, fused["b2"], fused["w3"], fused["b3"])

    q1 = out[:B, 0:1]
    q2 = out[:B, 1:2]
    return q1, q2


# --------------------------- Parameter construction ---------------------------
def _xavier_uniform(key, fan_in, fan_out, dtype=jnp.float32):
    # torch.nn.init.xavier_uniform_(gain=1): U(-a, a), a = sqrt(6/(fan_in+fan_out))
    bound = (6.0 / (fan_in + fan_out)) ** 0.5
    # stored as (in, out) so the math is x @ W (== torch x @ W^T)
    return jax.random.uniform(key, (fan_in, fan_out), dtype=dtype,
                              minval=-bound, maxval=bound)


def make_params(key, state_dim, hdim1=1024, hdim2=128):
    """Per-head parameters matching the PyTorch module init (xavier W, zero b)."""
    d_in = state_dim + 1
    keys = jax.random.split(key, 6)
    return {
        # head 1
        "w1a": _xavier_uniform(keys[0], d_in, hdim1),
        "b1a": jnp.zeros((1, hdim1), jnp.float32),
        "w2a": _xavier_uniform(keys[1], hdim1, hdim2),
        "b2a": jnp.zeros((1, hdim2), jnp.float32),
        "w3a": _xavier_uniform(keys[2], hdim2, 1),
        "b3a": jnp.zeros((1, 1), jnp.float32),
        # head 2
        "w1b": _xavier_uniform(keys[3], d_in, hdim1),
        "b1b": jnp.zeros((1, hdim1), jnp.float32),
        "w2b": _xavier_uniform(keys[4], hdim1, hdim2),
        "b2b": jnp.zeros((1, hdim2), jnp.float32),
        "w3b": _xavier_uniform(keys[5], hdim2, 1),
        "b3b": jnp.zeros((1, 1), jnp.float32),
    }


def _block_diag(a, b):
    m1, n1 = a.shape
    m2, n2 = b.shape
    out = jnp.zeros((m1 + m2, n1 + n2), a.dtype)
    out = out.at[:m1, :n1].set(a)
    out = out.at[m1:, n1:].set(b)
    return out


def fuse_params(p, state_dim, *, split_w2=None):
    """One-time fusion of the twin heads into the kernel's weight layout.

    split_w2: per-head (2, 1024, 128) W2 (for 128-wide-MXU chips) instead of
    the block-diagonal (2048, 256) W2. Auto-detected from the TPU generation.
    """
    if split_w2 is None:
        split_w2 = _is_narrow_mxu(_tpu_generation())
    w1 = jnp.concatenate([p["w1a"], p["w1b"]], axis=1)              # (D+1, 2048)
    fused = {
        "w1x": w1[:state_dim, :].astype(jnp.bfloat16),              # (D, 2048)
        "w1a": w1[state_dim:state_dim + 1, :].astype(jnp.float32),  # (1, 2048)
        "b1": jnp.concatenate([p["b1a"], p["b1b"]], axis=1),        # (1, 2048)
        "b2": jnp.concatenate([p["b2a"], p["b2b"]], axis=1),        # (1, 256)
        # Layer 3 stays f32 (tiny) and is applied on the VPU: row i = head i.
        "w3": jnp.concatenate([p["w3a"], p["w3b"]], axis=1).T
                 .astype(jnp.float32),                              # (2, 128)
        "b3": jnp.concatenate([p["b3a"], p["b3b"]], axis=1),        # (1, 2)
    }
    if split_w2:
        fused["w2s"] = jnp.stack([p["w2a"], p["w2b"]], axis=0).astype(jnp.bfloat16)
    else:
        fused["w2"] = _block_diag(p["w2a"], p["w2b"]).astype(jnp.bfloat16)
    return fused


# ------------------------------- References ----------------------------------
def _reference_fused(x, action, f):
    """Same math as the kernel (bf16 MXU operands, f32 accumulation), pure JAX."""
    hd2 = f["w3"].shape[1]
    h = jnp.dot(x.astype(jnp.bfloat16), f["w1x"],
                preferred_element_type=jnp.float32)
    h = jnp.maximum(h + action * f["w1a"] + f["b1"], 0.0)
    hb = h.astype(jnp.bfloat16)
    if "w2" in f:
        g = jnp.dot(hb, f["w2"], preferred_element_type=jnp.float32) + f["b2"]
    else:
        hd1 = f["w1x"].shape[1] // 2
        g1 = jnp.dot(hb[:, :hd1], f["w2s"][0], preferred_element_type=jnp.float32)
        g2 = jnp.dot(hb[:, hd1:], f["w2s"][1], preferred_element_type=jnp.float32)
        g = jnp.concatenate([g1, g2], axis=1) + f["b2"]
    g = jnp.maximum(g, 0.0)
    q1 = jnp.sum(g[:, :hd2] * f["w3"][0:1, :], axis=-1, keepdims=True) + f["b3"][:, 0:1]
    q2 = jnp.sum(g[:, hd2:] * f["w3"][1:2, :], axis=-1, keepdims=True) + f["b3"][:, 1:2]
    return q1, q2


def _reference_f32(x, action, p):
    """Original unfused f32 twin-head forward (module semantics)."""
    xc = jnp.concatenate([x, action], axis=1)
    h = jnp.maximum(xc @ p["w1a"] + p["b1a"], 0.0)
    h = jnp.maximum(h @ p["w2a"] + p["b2a"], 0.0)
    q1 = h @ p["w3a"] + p["b3a"]
    g = jnp.maximum(xc @ p["w1b"] + p["b1b"], 0.0)
    g = jnp.maximum(g @ p["w2b"] + p["b2b"], 0.0)
    q2 = g @ p["w3b"] + p["b3b"]
    return q1, q2


if __name__ == "__main__":
    # Small shapes consistent with the module: state_dim=31 (concat feature
    # dim 32); hidden sizes 1024 / 128 as in __init__.
    state_dim = 31
    key = jax.random.PRNGKey(0)
    k_x, k_a, k_p = jax.random.split(key, 3)

    params = make_params(k_p, state_dim)
    fused = fuse_params(params, state_dim)

    for batch in (8, 13):   # 13 exercises the padding / tile-rounding path
        kx, ka = jax.random.split(jax.random.fold_in(k_x, batch))
        x = jax.random.normal(kx, (batch, state_dim), jnp.float32)
        action = jax.random.normal(ka, (batch, 1), jnp.float32)

        q1, q2 = qnetwork_forward(x, action, fused)
        q1 = jax.block_until_ready(q1)
        q2 = jax.block_until_ready(q2)
        assert q1.shape == (batch, 1) and q2.shape == (batch, 1)

        # Exact-path check: same fused bf16 math in pure JAX.
        r1, r2 = _reference_fused(x, action, fused)
        assert jnp.allclose(q1, r1, atol=1e-2, rtol=1e-2)
        assert jnp.allclose(q2, r2, atol=1e-2, rtol=1e-2)

        # Semantics check vs. the original unfused f32 module (loose: bf16 W).
        s1, s2 = _reference_f32(x, action, params)
        assert jnp.allclose(q1, s1, atol=2e-1, rtol=5e-2)
        assert jnp.allclose(q2, s2, atol=2e-1, rtol=5e-2)

    print("KERNEL_OK")
</pallas_src>

<mosaic_0001>
module attributes {stable_mosaic.version = 11 : i64} {
  func.func @_qnet_kernel_fused_w2(%arg0: i32, %arg1: memref<8x31xf32, #tpu.memory_space<vmem>>, %arg2: memref<8x1xf32, #tpu.memory_space<vmem>>, %arg3: memref<31x2048xbf16, #tpu.memory_space<vmem>>, %arg4: memref<1x2048xf32, #tpu.memory_space<vmem>>, %arg5: memref<1x2048xf32, #tpu.memory_space<vmem>>, %arg6: memref<2048x256xbf16, #tpu.memory_space<vmem>>, %arg7: memref<1x256xf32, #tpu.memory_space<vmem>>, %arg8: memref<2x128xf32, #tpu.memory_space<vmem>>, %arg9: memref<1x2xf32, #tpu.memory_space<vmem>>, %arg10: memref<8x2xf32, #tpu.memory_space<vmem>>) attributes {dimension_semantics = [#tpu.dimension_semantics<parallel>], iteration_bounds = array<i64: 1>, scalar_prefetch = 0 : i64, scratch_operands = 0 : i64, tpu.core_type = #tpu.core_type<tc>, window_params = [{transform_indices = @transform_0, window_bounds = array<i64: 8, 31>}, {transform_indices = @transform_1, window_bounds = array<i64: 8, 1>}, {pipeline_mode = #tpu.pipeline_mode<synchronous>, transform_indices = @transform_2, window_bounds = array<i64: 31, 2048>}, {pipeline_mode = #tpu.pipeline_mode<synchronous>, transform_indices = @transform_3, window_bounds = array<i64: 1, 2048>}, {pipeline_mode = #tpu.pipeline_mode<synchronous>, transform_indices = @transform_4, window_bounds = array<i64: 1, 2048>}, {pipeline_mode = #tpu.pipeline_mode<synchronous>, transform_indices = @transform_5, window_bounds = array<i64: 2048, 256>}, {pipeline_mode = #tpu.pipeline_mode<synchronous>, transform_indices = @transform_6, window_bounds = array<i64: 1, 256>}, {pipeline_mode = #tpu.pipeline_mode<synchronous>, transform_indices = @transform_7, window_bounds = array<i64: 2, 128>}, {pipeline_mode = #tpu.pipeline_mode<synchronous>, transform_indices = @transform_8, window_bounds = array<i64: 1, 2>}, {transform_indices = @transform_9, window_bounds = array<i64: 8, 2>}]} {
    %c0 = arith.constant 0 : index
    %c0_0 = arith.constant 0 : index
    %0 = vector.load %arg1[%c0, %c0_0] : memref<8x31xf32, #tpu.memory_space<vmem>>, vector<8x31xf32>
    %c0_1 = arith.constant 0 : index
    %c0_2 = arith.constant 0 : index
    %1 = vector.load %arg2[%c0_1, %c0_2] : memref<8x1xf32, #tpu.memory_space<vmem>>, vector<8x1xf32>
    %2 = arith.truncf %0 : vector<8x31xf32> to vector<8x31xbf16>
    %c0_3 = arith.constant 0 : index
    %c0_4 = arith.constant 0 : index
    %3 = vector.load %arg3[%c0_3, %c0_4] : memref<31x2048xbf16, #tpu.memory_space<vmem>>, vector<31x2048xbf16>
    %cst = arith.constant dense<0.000000e+00> : vector<8x2048xf32>
    %4 = tpu.matmul %2, %3, %cst {dimension_numbers = #tpu.dot_dimension_numbers<[1], [0], [0], [1], [0, 0, 1, 1], [], []>} : vector<8x31xbf16>, vector<31x2048xbf16>, vector<8x2048xf32> -> vector<8x2048xf32>
    %c0_5 = arith.constant 0 : index
    %c0_6 = arith.constant 0 : index
    %5 = vector.load %arg4[%c0_5, %c0_6] : memref<1x2048xf32, #tpu.memory_space<vmem>>, vector<1x2048xf32>
    %6 = vector.broadcast %1 : vector<8x1xf32> to vector<8x2048xf32>
    %7 = vector.broadcast %5 : vector<1x2048xf32> to vector<8x2048xf32>
    %8 = arith.mulf %6, %7 : vector<8x2048xf32>
    %9 = arith.addf %4, %8 : vector<8x2048xf32>
    %c0_7 = arith.constant 0 : index
    %c0_8 = arith.constant 0 : index
    %10 = vector.load %arg5[%c0_7, %c0_8] : memref<1x2048xf32, #tpu.memory_space<vmem>>, vector<1x2048xf32>
    %11 = vector.broadcast %10 : vector<1x2048xf32> to vector<8x2048xf32>
    %12 = arith.addf %9, %11 : vector<8x2048xf32>
    %cst_9 = arith.constant 0.000000e+00 : f32
    %13 = vector.broadcast %cst_9 : f32 to vector<8x2048xf32>
    %14 = arith.maximumf %12, %13 : vector<8x2048xf32>
    %15 = arith.truncf %14 : vector<8x2048xf32> to vector<8x2048xbf16>
    %c0_10 = arith.constant 0 : index
    %c0_11 = arith.constant 0 : index
    %16 = vector.load %arg6[%c0_10, %c0_11] : memref<2048x256xbf16, #tpu.memory_space<vmem>>, vector<2048x256xbf16>
    %cst_12 = arith.constant dense<0.000000e+00> : vector<8x256xf32>
    %17 = tpu.matmul %15, %16, %cst_12 {dimension_numbers = #tpu.dot_dimension_numbers<[1], [0], [0], [1], [0, 0, 1, 1], [], []>} : vector<8x2048xbf16>, vector<2048x256xbf16>, vector<8x256xf32> -> vector<8x256xf32>
    %c0_13 = arith.constant 0 : index
    %c0_14 = arith.constant 0 : index
    %18 = vector.load %arg7[%c0_13, %c0_14] : memref<1x256xf32, #tpu.memory_space<vmem>>, vector<1x256xf32>
    %19 = vector.broadcast %18 : vector<1x256xf32> to vector<8x256xf32>
    %20 = arith.addf %17, %19 : vector<8x256xf32>
    %cst_15 = arith.constant 0.000000e+00 : f32
    %21 = vector.broadcast %cst_15 : f32 to vector<8x256xf32>
    %22 = arith.maximumf %20, %21 : vector<8x256xf32>
    %23 = vector.extract_strided_slice %22 {offsets = [0, 0], sizes = [8, 128], strides = [1, 1]} : vector<8x256xf32> to vector<8x128xf32>
    %c0_16 = arith.constant 0 : index
    %c0_17 = arith.constant 0 : index
    %24 = vector.load %arg8[%c0_16, %c0_17] : memref<2x128xf32, #tpu.memory_space<vmem>>, vector<1x128xf32>
    %25 = vector.broadcast %24 : vector<1x128xf32> to vector<8x128xf32>
    %26 = arith.mulf %23, %25 : vector<8x128xf32>
    %cst_18 = arith.constant dense<0.000000e+00> : vector<8xf32>
    %27 = vector.multi_reduction <add>, %26, %cst_18 [1] : vector<8x128xf32> to vector<8xf32>
    %28 = vector.shape_cast %27 : vector<8xf32> to vector<8x1xf32>
    %29 = vector.extract_strided_slice %22 {offsets = [0, 128], sizes = [8, 128], strides = [1, 1]} : vector<8x256xf32> to vector<8x128xf32>
    %c1 = arith.constant 1 : index
    %c0_19 = arith.constant 0 : index
    %30 = vector.load %arg8[%c1, %c0_19] : memref<2x128xf32, #tpu.memory_space<vmem>>, vector<1x128xf32>
    %31 = vector.broadcast %30 : vector<1x128xf32> to vector<8x128xf32>
    %32 = arith.mulf %29, %31 : vector<8x128xf32>
    %cst_20 = arith.constant dense<0.000000e+00> : vector<8xf32>
    %33 = vector.multi_reduction <add>, %32, %cst_20 [1] : vector<8x128xf32> to vector<8xf32>
    %34 = vector.shape_cast %33 : vector<8xf32> to vector<8x1xf32>
    %35 = tpu.concatenate %28, %34 in 1 : vector<8x1xf32>, vector<8x1xf32> -> vector<8x2xf32>
    %c0_21 = arith.constant 0 : index
    %c0_22 = arith.constant 0 : index
    %36 = vector.load %arg9[%c0_21, %c0_22] : memref<1x2xf32, #tpu.memory_space<vmem>>, vector<1x2xf32>
    %37 = vector.broadcast %36 : vector<1x2xf32> to vector<8x2xf32>
    %38 = arith.addf %35, %37 : vector<8x2xf32>
    %c0_23 = arith.constant 0 : index
    %c0_24 = arith.constant 0 : index
    %39 = vector.load %arg10[%c0_23, %c0_24] : memref<8x2xf32, #tpu.memory_space<vmem>>, vector<8x2xf32>
    tpu.vector_store %arg10[%c0_23, %c0_24], %38 {strides = array<i32>} : memref<8x2xf32, #tpu.memory_space<vmem>>, vector<8x2xf32>,
    return
  }
  func.func @transform_0(%arg0: i32) -> (i32, i32) {
    %c0_i32 = arith.constant 0 : i32
    %c0_i32_0 = arith.constant 0 : i32
    return %arg0, %c0_i32 : i32, i32
  }
  func.func @transform_1(%arg0: i32) -> (i32, i32) {
    %c0_i32 = arith.constant 0 : i32
    %c0_i32_0 = arith.constant 0 : i32
    return %arg0, %c0_i32 : i32, i32
  }
  func.func @transform_2(%arg0: i32) -> (i32, i32) {
    %c0_i32 = arith.constant 0 : i32
    %c0_i32_0 = arith.constant 0 : i32
    %c0_i32_1 = arith.constant 0 : i32
    return %c0_i32, %c0_i32_0 : i32, i32
  }
  func.func @transform_3(%arg0: i32) -> (i32, i32) {
    %c0_i32 = arith.constant 0 : i32
    %c0_i32_0 = arith.constant 0 : i32
    %c0_i32_1 = arith.constant 0 : i32
    return %c0_i32, %c0_i32_0 : i32, i32
  }
  func.func @transform_4(%arg0: i32) -> (i32, i32) {
    %c0_i32 = arith.constant 0 : i32
    %c0_i32_0 = arith.constant 0 : i32
    %c0_i32_1 = arith.constant 0 : i32
    return %c0_i32, %c0_i32_0 : i32, i32
  }
  func.func @transform_5(%arg0: i32) -> (i32, i32) {
    %c0_i32 = arith.constant 0 : i32
    %c0_i32_0 = arith.constant 0 : i32
    %c0_i32_1 = arith.constant 0 : i32
    return %c0_i32, %c0_i32_0 : i32, i32
  }
  func.func @transform_6(%arg0: i32) -> (i32, i32) {
    %c0_i32 = arith.constant 0 : i32
    %c0_i32_0 = arith.constant 0 : i32
    %c0_i32_1 = arith.constant 0 : i32
    return %c0_i32, %c0_i32_0 : i32, i32
  }
  func.func @transform_7(%arg0: i32) -> (i32, i32) {
    %c0_i32 = arith.constant 0 : i32
    %c0_i32_0 = arith.constant 0 : i32
    %c0_i32_1 = arith.constant 0 : i32
    return %c0_i32, %c0_i32_0 : i32, i32
  }
  func.func @transform_8(%arg0: i32) -> (i32, i32) {
    %c0_i32 = arith.constant 0 : i32
    %c0_i32_0 = arith.constant 0 : i32
    %c0_i32_1 = arith.constant 0 : i32
    return %c0_i32, %c0_i32_0 : i32, i32
  }
  func.func @transform_9(%arg0: i32) -> (i32, i32) {
    %c0_i32 = arith.constant 0 : i32
    %c0_i32_0 = arith.constant 0 : i32
    return %arg0, %c0_i32 : i32, i32
  }
}

</mosaic_0001>

<llo_original>
// kernel: tpu_custom_call.1
$region0: #{tpu_custom_call.1}
  #allocation0 [shape = 'u32[]', space=smem, size = 0x4, offset = 0x4, fixed_abs, tag = 'smem constant byte address 0x4 - core index']
  #allocation1 [shape = 'u32[144,128]{1,0:T(1,128)}', space=vmem, size = 0x12000, scoped, tag = 'internal scratch']
  %s0 = inlined_call_operand.hbm [shape: f32[8,31], index: 0, kind: input, shape index: {}]
  %s1 = inlined_call_operand.vmem [shape: f32[8,1], index: 1, kind: input, shape index: {}]
  %s2 = inlined_call_operand.hbm [shape: bf16[31,2048], index: 2, kind: input, shape index: {}]
  %s3 = inlined_call_operand.vmem [shape: f32[1,2048], index: 3, kind: input, shape index: {}]
  %s4 = inlined_call_operand.hbm [shape: f32[1,2048], index: 4, kind: input, shape index: {}]
  %s5 = inlined_call_operand.hbm [shape: bf16[2048,256], index: 5, kind: input, shape index: {}]
  %s6 = inlined_call_operand.vmem [shape: f32[1,256], index: 6, kind: input, shape index: {}]
  %s7 = inlined_call_operand.vmem [shape: f32[2,128], index: 7, kind: input, shape index: {}]
  %s8 = inlined_call_operand.vmem [shape: f32[1,2], index: 8, kind: input, shape index: {}]
  %s9 = inlined_call_operand.vmem [shape: f32[8,2], index: 9, kind: output, shape index: {}]
  %s10 = sld [smem:[#allocation0]]
  $region62: #{tpu_custom_call.1} parent=0
    _
  %s12 = ssub.s32 1, %s10
  %s13 = scalar_select 0, %s12, %s10
  $region1: #{tpu_custom_call.1} parent=0
    #allocation2 [shape = 'u8[4096]{0}', space=vmem, size = 0x1000, scoped, tag = 'input window, operand 0, single buffered']
    #allocation3 [shape = 's32[1]{0}', space=sflag, size = 0x4, scoped, tag = 'scoped memory for tpu_custom_call.1']
    #allocation4 [shape = 'u8[131072]{0}', space=vmem, size = 0x20000, scoped, tag = 'input window, operand 2, single buffered']
    #allocation5 [shape = 's32[1]{0}', space=sflag, size = 0x4, scoped, tag = 'scoped memory for tpu_custom_call.1']
    #allocation6 [shape = 'u8[8192]{0}', space=vmem, size = 0x2000, scoped, tag = 'input window, operand 4, single buffered']
    #allocation7 [shape = 'u8[1048576]{0}', space=vmem, size = 0x100000, scoped, tag = 'input window, operand 5, single buffered']
    #allocation8 [shape = 's32[1]{0}', space=sflag, size = 0x4, scoped, tag = 'scoped memory for tpu_custom_call.1']
    %14 = vsyncpa [#allocation3], 0
    %15 = vsyncpa [#allocation5], 0
    %16 = vsyncpa [#allocation8], 0
    // Predicated region
    $region2: #{tpu_custom_call.1} parent=1 // pred_check
      _
    $region3: #{tpu_custom_call.1} parent=1 // pred_check_branch
      %18 = sbr.rel (0) target = $region5
    $region4: #{tpu_custom_call.1} parent=1 // pred_region
      %s20 = ssub.s32 128, 128
      %21 = vsyncadd [#allocation3], %s20
      %s23 = sshll.u32 [#allocation2], 4
      %s24 = int_to_ptr.vmem [resolvable:$true] %s23
      %26 = dma.hbm_to_vmem [thread:$0]  %s0, 128, %s24, [#allocation3]
    $region5: #{tpu_custom_call.1} parent=1 // pred_fallthru
      _
    // Predicated region
    $region6: #{tpu_custom_call.1} parent=1 // pred_check
      _
    $region7: #{tpu_custom_call.1} parent=1 // pred_check_branch
      %28 = sbr.rel (0) target = $region9
    $region8: #{tpu_custom_call.1} parent=1 // pred_region
      _
    $region9: #{tpu_custom_call.1} parent=1 // pred_fallthru
      _
    // Predicated region
    $region10: #{tpu_custom_call.1} parent=1 // pred_check
      _
    $region11: #{tpu_custom_call.1} parent=1 // pred_check_branch
      %30 = sbr.rel (0) target = $region13
    $region12: #{tpu_custom_call.1} parent=1 // pred_region
      %s32 = ssub.s32 4096, 4096
      %33 = vsyncadd [#allocation5], %s32
      %s34 = sshll.u32 [#allocation4], 4
      %s35 = int_to_ptr.vmem [resolvable:$true] %s34
      %40 = dma.hbm_to_vmem [thread:$0]  %s2, 4096, %s35, [#allocation5], 1024, 1024, 64
    $region13: #{tpu_custom_call.1} parent=1 // pred_fallthru
      _
    // Predicated region
    $region14: #{tpu_custom_call.1} parent=1 // pred_check
      _
    $region15: #{tpu_custom_call.1} parent=1 // pred_check_branch
      %42 = sbr.rel (0) target = $region17
    $region16: #{tpu_custom_call.1} parent=1 // pred_region
      _
    $region17: #{tpu_custom_call.1} parent=1 // pred_fallthru
      _
    // Predicated region
    $region18: #{tpu_custom_call.1} parent=1 // pred_check
      _
    $region19: #{tpu_custom_call.1} parent=1 // pred_check_branch
      %44 = sbr.rel (0) target = $region21
    $region20: #{tpu_custom_call.1} parent=1 // pred_region
      %s46 = ssub.s32 256, 256
      %47 = vsyncadd [#allocation5], %s46
      %s49 = sshll.u32 [#allocation6], 4
      %s50 = int_to_ptr.vmem [resolvable:$true] %s49
      %52 = dma.hbm_to_vmem [thread:$0]  %s4, 256, %s50, [#allocation5]
    $region21: #{tpu_custom_call.1} parent=1 // pred_fallthru
      _
    // Predicated region
    $region22: #{tpu_custom_call.1} parent=1 // pred_check
      _
    $region23: #{tpu_custom_call.1} parent=1 // pred_check_branch
      %54 = sbr.rel (0) target = $region25
    $region24: #{tpu_custom_call.1} parent=1 // pred_region
      %s56 = ssub.s32 32768, 32768
      %57 = vsyncadd [#allocation8], %s56
      %s58 = sshll.u32 [#allocation7], 4
      %s59 = int_to_ptr.vmem [resolvable:$true] %s58
      %64 = dma.hbm_to_vmem [thread:$0]  %s5, 32768, %s59, [#allocation8], 128, 128, 8
    $region25: #{tpu_custom_call.1} parent=1 // pred_fallthru
      _
    // Predicated region
    $region26: #{tpu_custom_call.1} parent=1 // pred_check
      _
    $region27: #{tpu_custom_call.1} parent=1 // pred_check_branch
      %66 = sbr.rel (0) target = $region29
    $region28: #{tpu_custom_call.1} parent=1 // pred_region
      _
    $region29: #{tpu_custom_call.1} parent=1 // pred_fallthru
      _
    // Predicated region
    $region30: #{tpu_custom_call.1} parent=1 // pred_check
      _
    $region31: #{tpu_custom_call.1} parent=1 // pred_check_branch
      %68 = sbr.rel (0) target = $region33
    $region32: #{tpu_custom_call.1} parent=1 // pred_region
      _
    $region33: #{tpu_custom_call.1} parent=1 // pred_fallthru
      _
    // Predicated region
    $region34: #{tpu_custom_call.1} parent=1 // pred_check
      _
    $region35: #{tpu_custom_call.1} parent=1 // pred_check_branch
      %70 = sbr.rel (0) target = $region37
    $region36: #{tpu_custom_call.1} parent=1 // pred_region
      _
    $region37: #{tpu_custom_call.1} parent=1 // pred_fallthru
      _
    // Predicated region
    $region38: #{tpu_custom_call.1} parent=1 // pred_check
      _
    $region39: #{tpu_custom_call.1} parent=1 // pred_check_branch
      %72 = sbr.rel (0) target = $region41
    $region40: #{tpu_custom_call.1} parent=1 // pred_region
      %73 = dma.done [#allocation3], 128
    $region41: #{tpu_custom_call.1} parent=1 // pred_fallthru
      _
    // Predicated region
    $region42: #{tpu_custom_call.1} parent=1 // pred_check
      _
    $region43: #{tpu_custom_call.1} parent=1 // pred_check_branch
      %75 = sbr.rel (0) target = $region45
    $region44: #{tpu_custom_call.1} parent=1 // pred_region
      %76 = dma.done [#allocation5], 4096
    $region45: #{tpu_custom_call.1} parent=1 // pred_fallthru
      _
    // Predicated region
    $region46: #{tpu_custom_call.1} parent=1 // pred_check
      _
    $region47: #{tpu_custom_call.1} parent=1 // pred_check_branch
      %78 = sbr.rel (0) target = $region49
    $region48: #{tpu_custom_call.1} parent=1 // pred_region
      %79 = dma.done [#allocation5], 256
    $region49: #{tpu_custom_call.1} parent=1 // pred_fallthru
      _
    // Predicated region
    $region50: #{tpu_custom_call.1} parent=1 // pred_check
      _
    $region51: #{tpu_custom_call.1} parent=1 // pred_check_branch
      %81 = sbr.rel (0) target = $region53
    $region52: #{tpu_custom_call.1} parent=1 // pred_region
      %82 = dma.done [#allocation8], 32768
    $region53: #{tpu_custom_call.1} parent=1 // pred_fallthru
      _
    %v84 = vld [vmem:[#allocation2] sm:$0xff]
    %v85 = vld [vmem:[%s1] sm:$0xff]
    %v86 = vpack.c.bf16 %v84, %v84
    %v87 = vld [vmem:[#allocation4] sm:$0xff]
    %v88 = vld [vmem:[#allocation4 + $0x8] sm:$0xff]
    %v89 = vld [vmem:[#allocation4 + $0x10] sm:$0xff]
    %v90 = vld [vmem:[#allocation4 + $0x18] sm:$0xff]
    %v91 = vld [vmem:[#allocation4 + $0x20] sm:$0xff]
    %v92 = vld [vmem:[#allocation4 + $0x28] sm:$0xff]
    %v93 = vld [vmem:[#allocation4 + $0x30] sm:$0xff]
    %v94 = vld [vmem:[#allocation4 + $0x38] sm:$0xff]
    %v95 = vld [vmem:[#allocation4 + $0x40] sm:$0xff]
    %v96 = vld [vmem:[#allocation4 + $0x48] sm:$0xff]
    %v97 = vld [vmem:[#allocation4 + $0x50] sm:$0xff]
    %v98 = vld [vmem:[#allocation4 + $0x58] sm:$0xff]
    %v99 = vld [vmem:[#allocation4 + $0x60] sm:$0xff]
    %v100 = vld [vmem:[#allocation4 + $0x68] sm:$0xff]
    %v101 = vld [vmem:[#allocation4 + $0x70] sm:$0xff]
    %v102 = vld [vmem:[#allocation4 + $0x78] sm:$0xff]
    %v103 = vld [vmem:[#allocation4 + $0x80] sm:$0xff]
    %v104 = vld [vmem:[#allocation4 + $0x88] sm:$0xff]
    %v105 = vld [vmem:[#allocation4 + $0x90] sm:$0xff]
    %v106 = vld [vmem:[#allocation4 + $0x98] sm:$0xff]
    %v107 = vld [vmem:[#allocation4 + $0xa0] sm:$0xff]
    %v108 = vld [vmem:[#allocation4 + $0xa8] sm:$0xff]
    %v109 = vld [vmem:[#allocation4 + $0xb0] sm:$0xff]
    %v110 = vld [vmem:[#allocation4 + $0xb8] sm:$0xff]
    %v111 = vld [vmem:[#allocation4 + $0xc0] sm:$0xff]
    %v112 = vld [vmem:[#allocation4 + $0xc8] sm:$0xff]
    %v113 = vld [vmem:[#allocation4 + $0xd0] sm:$0xff]
    %v114 = vld [vmem:[#allocation4 + $0xd8] sm:$0xff]
    %v115 = vld [vmem:[#allocation4 + $0xe0] sm:$0xff]
    %v116 = vld [vmem:[#allocation4 + $0xe8] sm:$0xff]
    %v117 = vld [vmem:[#allocation4 + $0xf0] sm:$0xff]
    %v118 = vld [vmem:[#allocation4 + $0xf8] sm:$0xff]
    %v119 = vld [vmem:[%s3] sm:$0xff]
    %v120 = vld [vmem:[%s3 + $0x8] sm:$0xff]
    %122 = vset.pattern.permute.xlu0 0
    %123 = vperm.xlu0 %122, %v85
    %v124 = vpop.permute.xlu0 %123
    %v128 = vlaneseq
    %v129 = vshrl.u32 %v128, 7
    %v130 = vsub.s32 0, %v129
    %v131 = vrot.slane %v119, %v130
    %v132 = vlaneseq
    %v133 = vshrl.u32 %v132, 7
    %v134 = vsub.s32 1, %v133
    %v135 = vrot.slane %v119, %v134
    %v136 = vlaneseq
    %v137 = vshrl.u32 %v136, 7
    %v138 = vsub.s32 2, %v137
    %v139 = vrot.slane %v119, %v138
    %v140 = vlaneseq
    %v141 = vshrl.u32 %v140, 7
    %v142 = vsub.s32 3, %v141
    %v143 = vrot.slane %v119, %v142
    %v144 = vlaneseq
    %v145 = vshrl.u32 %v144, 7
    %v146 = vsub.s32 4, %v145
    %v147 = vrot.slane %v119, %v146
    %v148 = vlaneseq
    %v149 = vshrl.u32 %v148, 7
    %v150 = vsub.s32 5, %v149
    %v151 = vrot.slane %v119, %v150
    %v152 = vlaneseq
    %v153 = vshrl.u32 %v152, 7
    %v154 = vsub.s32 6, %v153
    %v155 = vrot.slane %v119, %v154
    %v156 = vlaneseq
    %v157 = vshrl.u32 %v156, 7
    %v158 = vsub.s32 7, %v157
    %v159 = vrot.slane %v119, %v158
    %v160 = vlaneseq
    %v161 = vshrl.u32 %v160, 7
    %v162 = vsub.s32 0, %v161
    %v163 = vrot.slane %v120, %v162
    %v164 = vlaneseq
    %v165 = vshrl.u32 %v164, 7
    %v166 = vsub.s32 1, %v165
    %v167 = vrot.slane %v120, %v166
    %v168 = vlaneseq
    %v169 = vshrl.u32 %v168, 7
    %v170 = vsub.s32 2, %v169
    %v171 = vrot.slane %v120, %v170
    %v172 = vlaneseq
    %v173 = vshrl.u32 %v172, 7
    %v174 = vsub.s32 3, %v173
    %v175 = vrot.slane %v120, %v174
    %v176 = vlaneseq
    %v177 = vshrl.u32 %v176, 7
    %v178 = vsub.s32 4, %v177
    %v179 = vrot.slane %v120, %v178
    %v180 = vlaneseq
    %v181 = vshrl.u32 %v180, 7
    %v182 = vsub.s32 5, %v181
    %v183 = vrot.slane %v120, %v182
    %v184 = vlaneseq
    %v185 = vshrl.u32 %v184, 7
    %v186 = vsub.s32 6, %v185
    %v187 = vrot.slane %v120, %v186
    %v188 = vlaneseq
    %v189 = vshrl.u32 %v188, 7
    %v190 = vsub.s32 7, %v189
    %v191 = vrot.slane %v120, %v190
    %v208 = vmul.f32 %v124, %v131
    %v209 = vmul.f32 %v124, %v135
    %v210 = vmul.f32 %v124, %v139
    %v211 = vmul.f32 %v124, %v143
    %v212 = vmul.f32 %v124, %v147
    %v213 = vmul.f32 %v124, %v151
    %v214 = vmul.f32 %v124, %v155
    %v215 = vmul.f32 %v124, %v159
    %v216 = vmul.f32 %v124, %v163
    %v217 = vmul.f32 %v124, %v167
    %v218 = vmul.f32 %v124, %v171
    %v219 = vmul.f32 %v124, %v175
    %v220 = vmul.f32 %v124, %v179
    %v221 = vmul.f32 %v124, %v183
    %v222 = vmul.f32 %v124, %v187
    %v223 = vmul.f32 %v124, %v191
    %v256 = vunpack.c.l.b16 %v87
    %v257 = vunpack.c.h.b16 %v87
    %v258 = vunpack.c.l.b16 %v88
    %v259 = vunpack.c.h.b16 %v88
    %v260 = vunpack.c.l.b16 %v89
    %v261 = vunpack.c.h.b16 %v89
    %v262 = vunpack.c.l.b16 %v90
    %v263 = vunpack.c.h.b16 %v90
    %v264 = vunpack.c.l.b16 %v91
    %v265 = vunpack.c.h.b16 %v91
    %v266 = vunpack.c.l.b16 %v92
    %v267 = vunpack.c.h.b16 %v92
    %v268 = vunpack.c.l.b16 %v93
    %v269 = vunpack.c.h.b16 %v93
    %v270 = vunpack.c.l.b16 %v94
    %v271 = vunpack.c.h.b16 %v94
    %v272 = vunpack.c.l.b16 %v95
    %v273 = vunpack.c.h.b16 %v95
    %v274 = vunpack.c.l.b16 %v96
    %v275 = vunpack.c.h.b16 %v96
    %v276 = vunpack.c.l.b16 %v97
    %v277 = vunpack.c.h.b16 %v97
    %v278 = vunpack.c.l.b16 %v98
    %v279 = vunpack.c.h.b16 %v98
    %v280 = vunpack.c.l.b16 %v99
    %v281 = vunpack.c.h.b16 %v99
    %v282 = vunpack.c.l.b16 %v100
    %v283 = vunpack.c.h.b16 %v100
    %v284 = vunpack.c.l.b16 %v101
    %v285 = vunpack.c.h.b16 %v101
    %v286 = vunpack.c.l.b16 %v102
    %v287 = vunpack.c.h.b16 %v102
    %v288 = vunpack.c.l.b16 %v103
    %v289 = vunpack.c.h.b16 %v103
    %v290 = vunpack.c.l.b16 %v104
    %v291 = vunpack.c.h.b16 %v104
    %v292 = vunpack.c.l.b16 %v105
    %v293 = vunpack.c.h.b16 %v105
    %v294 = vunpack.c.l.b16 %v106
    %v295 = vunpack.c.h.b16 %v106
    %v296 = vunpack.c.l.b16 %v107
    %v297 = vunpack.c.h.b16 %v107
    %v298 = vunpack.c.l.b16 %v108
    %v299 = vunpack.c.h.b16 %v108
    %v300 = vunpack.c.l.b16 %v109
    %v301 = vunpack.c.h.b16 %v109
    %v302 = vunpack.c.l.b16 %v110
    %v303 = vunpack.c.h.b16 %v110
    %v304 = vunpack.c.l.b16 %v111
    %v305 = vunpack.c.h.b16 %v111
    %v306 = vunpack.c.l.b16 %v112
    %v307 = vunpack.c.h.b16 %v112
    %v308 = vunpack.c.l.b16 %v113
    %v309 = vunpack.c.h.b16 %v113
    %v310 = vunpack.c.l.b16 %v114
    %v311 = vunpack.c.h.b16 %v114
    %v312 = vunpack.c.l.b16 %v115
    %v313 = vunpack.c.h.b16 %v115
    %v314 = vunpack.c.l.b16 %v116
    %v315 = vunpack.c.h.b16 %v116
    %v316 = vunpack.c.l.b16 %v117
    %v317 = vunpack.c.h.b16 %v117
    %v318 = vunpack.c.l.b16 %v118
    %v319 = vunpack.c.h.b16 %v118
    %v320 = vpack.c.b16 %v272, %v256
    %v321 = vpack.c.b16 %v273, %v257
    %v322 = vpack.c.b16 %v274, %v258
    %v323 = vpack.c.b16 %v275, %v259
    %v324 = vpack.c.b16 %v276, %v260
    %v325 = vpack.c.b16 %v277, %v261
    %v326 = vpack.c.b16 %v278, %v262
    %v327 = vpack.c.b16 %v279, %v263
    %v328 = vpack.c.b16 %v280, %v264
    %v329 = vpack.c.b16 %v281, %v265
    %v330 = vpack.c.b16 %v282, %v266
    %v331 = vpack.c.b16 %v283, %v267
    %v332 = vpack.c.b16 %v284, %v268
    %v333 = vpack.c.b16 %v285, %v269
    %v334 = vpack.c.b16 %v286, %v270
    %v335 = vpack.c.b16 %v287, %v271
    %v336 = vpack.c.b16 %v304, %v288
    %v337 = vpack.c.b16 %v305, %v289
    %v338 = vpack.c.b16 %v306, %v290
    %v339 = vpack.c.b16 %v307, %v291
    %v340 = vpack.c.b16 %v308, %v292
    %v341 = vpack.c.b16 %v309, %v293
    %v342 = vpack.c.b16 %v310, %v294
    %v343 = vpack.c.b16 %v311, %v295
    %v344 = vpack.c.b16 %v312, %v296
    %v345 = vpack.c.b16 %v313, %v297
    %v346 = vpack.c.b16 %v314, %v298
    %v347 = vpack.c.b16 %v315, %v299
    %v348 = vpack.c.b16 %v316, %v300
    %v349 = vpack.c.b16 %v317, %v301
    %v350 = vpack.c.b16 %v318, %v302
    %v351 = vpack.c.b16 %v319, %v303
    %vm368 = vcmask 252928
    %v370 = vsel %vm368, %v86, 0
    %vm372 = vcmask 1046528
    %vm373 = vcmask 1047552
    %v374 = vsel %vm372, 4294967295, 65535
    %v375 = vsel %vm373, %v374, 0
    %v377 = vand.u32 %v336, %v375
    %v380 = vand.u32 %v337, %v375
    %v383 = vand.u32 %v338, %v375
    %v386 = vand.u32 %v339, %v375
    %v389 = vand.u32 %v340, %v375
    %v392 = vand.u32 %v341, %v375
    %v395 = vand.u32 %v342, %v375
    %v398 = vand.u32 %v343, %v375
    %v401 = vand.u32 %v344, %v375
    %v404 = vand.u32 %v345, %v375
    %v407 = vand.u32 %v346, %v375
    %v410 = vand.u32 %v347, %v375
    %v413 = vand.u32 %v348, %v375
    %v416 = vand.u32 %v349, %v375
    %v419 = vand.u32 %v350, %v375
    %v422 = vand.u32 %v351, %v375
    %424 = vmatprep.subr.bf16.mxu0 %v321
    %425 = vmatpush1.bf16.msra.mxu0 %v320
    %426 = vmatprep.subr.bf16.mxu0 %v380
    %427 = vmatpush1.bf16.msra.mxu0 %v377
    %428 = vmatprep.subr.bf16.mxu0 0
    %429 = vmatpush1.bf16.msra.mxu0 0
    %430 = vmatprep.subr.bf16.mxu0 0
    %431 = vmatpush1.bf16.msra.mxu0 0
    %432 = vmatprep.subr.bf16.mxu0 0
    %433 = vmatpush1.bf16.msra.mxu0 0
    %434 = vmatprep.subr.bf16.mxu0 0
    %435 = vmatpush1.bf16.msra.mxu0 0
    %436 = vmatprep.subr.bf16.mxu0 0
    %437 = vmatpush1.bf16.msra.mxu0 0
    %438 = vmatprep.subr.bf16.mxu0 0
    %439 = vmatpush1.bf16.msra.mxu0 0
    %440 = vmatprep.subr.bf16.mxu0 0
    %441 = vmatpush1.bf16.msra.mxu0 0
    %442 = vmatprep.subr.bf16.mxu0 0
    %443 = vmatpush1.bf16.msra.mxu0 0
    %444 = vmatprep.subr.bf16.mxu0 0
    %445 = vmatpush1.bf16.msra.mxu0 0
    %446 = vmatprep.subr.bf16.mxu0 0
    %447 = vmatpush1.bf16.msra.mxu0 0
    %448 = vmatprep.subr.bf16.mxu0 0
    %449 = vmatpush1.bf16.msra.mxu0 0
    %450 = vmatprep.subr.bf16.mxu0 0
    %451 = vmatpush1.bf16.msra.mxu0 0
    %452 = vmatprep.subr.bf16.mxu0 0
    %453 = vmatpush1.bf16.msra.mxu0 0
    %454 = vmatprep.subr.bf16.mxu0 0
    %455 = vmatpush1.bf16.msra.mxu0 0
    %456 = vmatprep.mubr.bf16.mxu0 0
    %457 = vmatmul.mubr.bf16.gmra.mrb[0].mxu0 %v370
    %v458 = vpop.f32.mrb[0].mxu0
    %v459 = vadd.f32 %v208, %v458
    %v460 = vpop.f32.mrb[0].mxu0
    %v461 = vadd.f32 %v209, %v460
    %v462 = vpop.f32.mrb[0].mxu0
    %v463 = vpop.f32.mrb[0].mxu0
    %464 = vdwg.mxu0
    %465 = vmatprep.subr.bf16.mxu0 %v323
    %466 = vmatpush1.bf16.msra.mxu0 %v322
    %467 = vmatprep.subr.bf16.mxu0 %v386
    %468 = vmatpush1.bf16.msra.mxu0 %v383
    %469 = vmatprep.subr.bf16.mxu0 0
    %470 = vmatpush1.bf16.msra.mxu0 0
    %471 = vmatprep.subr.bf16.mxu0 0
    %472 = vmatpush1.bf16.msra.mxu0 0
    %473 = vmatprep.subr.bf16.mxu0 0
    %474 = vmatpush1.bf16.msra.mxu0 0
    %475 = vmatprep.subr.bf16.mxu0 0
    %476 = vmatpush1.bf16.msra.mxu0 0
    %477 = vmatprep.subr.bf16.mxu0 0
    %478 = vmatpush1.bf16.msra.mxu0 0
    %479 = vmatprep.subr.bf16.mxu0 0
    %480 = vmatpush1.bf16.msra.mxu0 0
    %481 = vmatprep.subr.bf16.mxu0 0
    %482 = vmatpush1.bf16.msra.mxu0 0
    %483 = vmatprep.subr.bf16.mxu0 0
    %484 = vmatpush1.bf16.msra.mxu0 0
    %485 = vmatprep.subr.bf16.mxu0 0
    %486 = vmatpush1.bf16.msra.mxu0 0
    %487 = vmatprep.subr.bf16.mxu0 0
    %488 = vmatpush1.bf16.msra.mxu0 0
    %489 = vmatprep.subr.bf16.mxu0 0
    %490 = vmatpush1.bf16.msra.mxu0 0
    %491 = vmatprep.subr.bf16.mxu0 0
    %492 = vmatpush1.bf16.msra.mxu0 0
    %493 = vmatprep.subr.bf16.mxu0 0
    %494 = vmatpush1.bf16.msra.mxu0 0
    %495 = vmatprep.subr.bf16.mxu0 0
    %496 = vmatpush1.bf16.msra.mxu0 0
    %497 = vmatprep.mubr.bf16.mxu0 0
    %498 = vmatmul.mubr.bf16.gmra.mrb[0].mxu0 %v370
    %v499 = vpop.f32.mrb[0].mxu0
    %v500 = vadd.f32 %v210, %v499
    %v501 = vpop.f32.mrb[0].mxu0
    %v502 = vadd.f32 %v211, %v501
    %v503 = vpop.f32.mrb[0].mxu0
    %v504 = vpop.f32.mrb[0].mxu0
    %505 = vdwg.mxu0
    %506 = vmatprep.subr.bf16.mxu0 %v325
    %507 = vmatpush1.bf16.msra.mxu0 %v324
    %508 = vmatprep.subr.bf16.mxu0 %v392
    %509 = vmatpush1.bf16.msra.mxu0 %v389
    %510 = vmatprep.subr.bf16.mxu0 0
    %511 = vmatpush1.bf16.msra.mxu0 0
    %512 = vmatprep.subr.bf16.mxu0 0
    %513 = vmatpush1.bf16.msra.mxu0 0
    %514 = vmatprep.subr.bf16.mxu0 0
    %515 = vmatpush1.bf16.msra.mxu0 0
    %516 = vmatprep.subr.bf16.mxu0 0
    %517 = vmatpush1.bf16.msra.mxu0 0
    %518 = vmatprep.subr.bf16.mxu0 0
    %519 = vmatpush1.bf16.msra.mxu0 0
    %520 = vmatprep.subr.bf16.mxu0 0
    %521 = vmatpush1.bf16.msra.mxu0 0
    %522 = vmatprep.subr.bf16.mxu0 0
    %523 = vmatpush1.bf16.msra.mxu0 0
    %524 = vmatprep.subr.bf16.mxu0 0
    %525 = vmatpush1.bf16.msra.mxu0 0
    %526 = vmatprep.subr.bf16.mxu0 0
    %527 = vmatpush1.bf16.msra.mxu0 0
    %528 = vmatprep.subr.bf16.mxu0 0
    %529 = vmatpush1.bf16.msra.mxu0 0
    %530 = vmatprep.subr.bf16.mxu0 0
    %531 = vmatpush1.bf16.msra.mxu0 0
    %532 = vmatprep.subr.bf16.mxu0 0
    %533 = vmatpush1.bf16.msra.mxu0 0
    %534 = vmatprep.subr.bf16.mxu0 0
    %535 = vmatpush1.bf16.msra.mxu0 0
    %536 = vmatprep.subr.bf16.mxu0 0
    %537 = vmatpush1.bf16.msra.mxu0 0
    %538 = vmatprep.mubr.bf16.mxu0 0
    %539 = vmatmul.mubr.bf16.gmra.mrb[0].mxu0 %v370
    %v540 = vpop.f32.mrb[0].mxu0
    %v541 = vadd.f32 %v212, %v540
    %v542 = vpop.f32.mrb[0].mxu0
    %v543 = vadd.f32 %v213, %v542
    %v544 = vpop.f32.mrb[0].mxu0
    %v545 = vpop.f32.mrb[0].mxu0
    %546 = vdwg.mxu0
    %547 = vmatprep.subr.bf16.mxu0 %v327
    %548 = vmatpush1.bf16.msra.mxu0 %v326
    %549 = vmatprep.subr.bf16.mxu0 %v398
    %550 = vmatpush1.bf16.msra.mxu0 %v395
    %551 = vmatprep.subr.bf16.mxu0 0
    %552 = vmatpush1.bf16.msra.mxu0 0
    %553 = vmatprep.subr.bf16.mxu0 0
    %554 = vmatpush1.bf16.msra.mxu0 0
    %555 = vmatprep.subr.bf16.mxu0 0
    %556 = vmatpush1.bf16.msra.mxu0 0
    %557 = vmatprep.subr.bf16.mxu0 0
    %558 = vmatpush1.bf16.msra.mxu0 0
    %559 = vmatprep.subr.bf16.mxu0 0
    %560 = vmatpush1.bf16.msra.mxu0 0
    %561 = vmatprep.subr.bf16.mxu0 0
    %562 = vmatpush1.bf16.msra.mxu0 0
    %563 = vmatprep.subr.bf16.mxu0 0
    %564 = vmatpush1.bf16.msra.mxu0 0
    %565 = vmatprep.subr.bf16.mxu0 0
    %566 = vmatpush1.bf16.msra.mxu0 0
    %567 = vmatprep.subr.bf16.mxu0 0
    %568 = vmatpush1.bf16.msra.mxu0 0
    %569 = vmatprep.subr.bf16.mxu0 0
    %570 = vmatpush1.bf16.msra.mxu0 0
    %571 = vmatprep.subr.bf16.mxu0 0
    %572 = vmatpush1.bf16.msra.mxu0 0
    %573 = vmatprep.subr.bf16.mxu0 0
    %574 = vmatpush1.bf16.msra.mxu0 0
    %575 = vmatprep.subr.bf16.mxu0 0
    %576 = vmatpush1.bf16.msra.mxu0 0
    %577 = vmatprep.subr.bf16.mxu0 0
    %578 = vmatpush1.bf16.msra.mxu0 0
    %579 = vmatprep.mubr.bf16.mxu0 0
    %580 = vmatmul.mubr.bf16.gmra.mrb[0].mxu0 %v370
    %v581 = vpop.f32.mrb[0].mxu0
    %v582 = vadd.f32 %v214, %v581
    %v583 = vpop.f32.mrb[0].mxu0
    %v584 = vadd.f32 %v215, %v583
    %v585 = vpop.f32.mrb[0].mxu0
    %v586 = vpop.f32.mrb[0].mxu0
    %587 = vdwg.mxu0
    %588 = vmatprep.subr.bf16.mxu0 %v329
    %589 = vmatpush1.bf16.msra.mxu0 %v328
    %590 = vmatprep.subr.bf16.mxu0 %v404
    %591 = vmatpush1.bf16.msra.mxu0 %v401
    %592 = vmatprep.subr.bf16.mxu0 0
    %593 = vmatpush1.bf16.msra.mxu0 0
    %594 = vmatprep.subr.bf16.mxu0 0
    %595 = vmatpush1.bf16.msra.mxu0 0
    %596 = vmatprep.subr.bf16.mxu0 0
    %597 = vmatpush1.bf16.msra.mxu0 0
    %598 = vmatprep.subr.bf16.mxu0 0
    %599 = vmatpush1.bf16.msra.mxu0 0
    %600 = vmatprep.subr.bf16.mxu0 0
    %601 = vmatpush1.bf16.msra.mxu0 0
    %602 = vmatprep.subr.bf16.mxu0 0
    %603 = vmatpush1.bf16.msra.mxu0 0
    %604 = vmatprep.subr.bf16.mxu0 0
    %605 = vmatpush1.bf16.msra.mxu0 0
    %606 = vmatprep.subr.bf16.mxu0 0
    %607 = vmatpush1.bf16.msra.mxu0 0
    %608 = vmatprep.subr.bf16.mxu0 0
    %609 = vmatpush1.bf16.msra.mxu0 0
    %610 = vmatprep.subr.bf16.mxu0 0
    %611 = vmatpush1.bf16.msra.mxu0 0
    %612 = vmatprep.subr.bf16.mxu0 0
    %613 = vmatpush1.bf16.msra.mxu0 0
    %614 = vmatprep.subr.bf16.mxu0 0
    %615 = vmatpush1.bf16.msra.mxu0 0
    %616 = vmatprep.subr.bf16.mxu0 0
    %617 = vmatpush1.bf16.msra.mxu0 0
    %618 = vmatprep.subr.bf16.mxu0 0
    %619 = vmatpush1.bf16.msra.mxu0 0
    %620 = vmatprep.mubr.bf16.mxu0 0
    %621 = vmatmul.mubr.bf16.gmra.mrb[0].mxu0 %v370
    %v622 = vpop.f32.mrb[0].mxu0
    %v623 = vadd.f32 %v216, %v622
    %v624 = vpop.f32.mrb[0].mxu0
    %v625 = vadd.f32 %v217, %v624
    %v626 = vpop.f32.mrb[0].mxu0
    %v627 = vpop.f32.mrb[0].mxu0
    %628 = vdwg.mxu0
    %629 = vmatprep.subr.bf16.mxu0 %v331
    %630 = vmatpush1.bf16.msra.mxu0 %v330
    %631 = vmatprep.subr.bf16.mxu0 %v410
    %632 = vmatpush1.bf16.msra.mxu0 %v407
    %633 = vmatprep.subr.bf16.mxu0 0
    %634 = vmatpush1.bf16.msra.mxu0 0
    %635 = vmatprep.subr.bf16.mxu0 0
    %636 = vmatpush1.bf16.msra.mxu0 0
    %637 = vmatprep.subr.bf16.mxu0 0
    %638 = vmatpush1.bf16.msra.mxu0 0
    %639 = vmatprep.subr.bf16.mxu0 0
    %640 = vmatpush1.bf16.msra.mxu0 0
    %641 = vmatprep.subr.bf16.mxu0 0
    %642 = vmatpush1.bf16.msra.mxu0 0
    %643 = vmatprep.subr.bf16.mxu0 0
    %644 = vmatpush1.bf16.msra.mxu0 0
    %645 = vmatprep.subr.bf16.mxu0 0
    %646 = vmatpush1.bf16.msra.mxu0 0
    %647 = vmatprep.subr.bf16.mxu0 0
    %648 = vmatpush1.bf16.msra.mxu0 0
    %649 = vmatprep.subr.bf16.mxu0 0
    %650 = vmatpush1.bf16.msra.mxu0 0
    %651 = vmatprep.subr.bf16.mxu0 0
    %652 = vmatpush1.bf16.msra.mxu0 0
    %653 = vmatprep.subr.bf16.mxu0 0
    %654 = vmatpush1.bf16.msra.mxu0 0
    %655 = vmatprep.subr.bf16.mxu0 0
    %656 = vmatpush1.bf16.msra.mxu0 0
    %657 = vmatprep.subr.bf16.mxu0 0
    %658 = vmatpush1.bf16.msra.mxu0 0
    %659 = vmatprep.subr.bf16.mxu0 0
    %660 = vmatpush1.bf16.msra.mxu0 0
    %661 = vmatprep.mubr.bf16.mxu0 0
    %662 = vmatmul.mubr.bf16.gmra.mrb[0].mxu0 %v370
    %v663 = vpop.f32.mrb[0].mxu0
    %v664 = vadd.f32 %v218, %v663
    %v665 = vpop.f32.mrb[0].mxu0
    %v666 = vadd.f32 %v219, %v665
    %v667 = vpop.f32.mrb[0].mxu0
    %v668 = vpop.f32.mrb[0].mxu0
    %669 = vdwg.mxu0
    %670 = vmatprep.subr.bf16.mxu0 %v333
    %671 = vmatpush1.bf16.msra.mxu0 %v332
    %672 = vmatprep.subr.bf16.mxu0 %v416
    %673 = vmatpush1.bf16.msra.mxu0 %v413
    %674 = vmatprep.subr.bf16.mxu0 0
    %675 = vmatpush1.bf16.msra.mxu0 0
    %676 = vmatprep.subr.bf16.mxu0 0
    %677 = vmatpush1.bf16.msra.mxu0 0
    %678 = vmatprep.subr.bf16.mxu0 0
    %679 = vmatpush1.bf16.msra.mxu0 0
    %680 = vmatprep.subr.bf16.mxu0 0
    %681 = vmatpush1.bf16.msra.mxu0 0
    %682 = vmatprep.subr.bf16.mxu0 0
    %683 = vmatpush1.bf16.msra.mxu0 0
    %684 = vmatprep.subr.bf16.mxu0 0
    %685 = vmatpush1.bf16.msra.mxu0 0
    %686 = vmatprep.subr.bf16.mxu0 0
    %687 = vmatpush1.bf16.msra.mxu0 0
    %688 = vmatprep.subr.bf16.mxu0 0
    %689 = vmatpush1.bf16.msra.mxu0 0
    %690 = vmatprep.subr.bf16.mxu0 0
    %691 = vmatpush1.bf16.msra.mxu0 0
    %692 = vmatprep.subr.bf16.mxu0 0
    %693 = vmatpush1.bf16.msra.mxu0 0
    %694 = vmatprep.subr.bf16.mxu0 0
    %695 = vmatpush1.bf16.msra.mxu0 0
    %696 = vmatprep.subr.bf16.mxu0 0
    %697 = vmatpush1.bf16.msra.mxu0 0
    %698 = vmatprep.subr.bf16.mxu0 0
    %699 = vmatpush1.bf16.msra.mxu0 0
    %700 = vmatprep.subr.bf16.mxu0 0
    %701 = vmatpush1.bf16.msra.mxu0 0
    %702 = vmatprep.mubr.bf16.mxu0 0
    %703 = vmatmul.mubr.bf16.gmra.mrb[0].mxu0 %v370
    %v704 = vpop.f32.mrb[0].mxu0
    %v705 = vadd.f32 %v220, %v704
    %v706 = vpop.f32.mrb[0].mxu0
    %v707 = vadd.f32 %v221, %v706
    %v708 = vpop.f32.mrb[0].mxu0
    %v709 = vpop.f32.mrb[0].mxu0
    %710 = vdwg.mxu0
    %711 = vmatprep.subr.bf16.mxu0 %v335
    %712 = vmatpush1.bf16.msra.mxu0 %v334
    %713 = vmatprep.subr.bf16.mxu0 %v422
    %714 = vmatpush1.bf16.msra.mxu0 %v419
    %715 = vmatprep.subr.bf16.mxu0 0
    %716 = vmatpush1.bf16.msra.mxu0 0
    %717 = vmatprep.subr.bf16.mxu0 0
    %718 = vmatpush1.bf16.msra.mxu0 0
    %719 = vmatprep.subr.bf16.mxu0 0
    %720 = vmatpush1.bf16.msra.mxu0 0
    %721 = vmatprep.subr.bf16.mxu0 0
    %722 = vmatpush1.bf16.msra.mxu0 0
    %723 = vmatprep.subr.bf16.mxu0 0
    %724 = vmatpush1.bf16.msra.mxu0 0
    %725 = vmatprep.subr.bf16.mxu0 0
    %726 = vmatpush1.bf16.msra.mxu0 0
    %727 = vmatprep.subr.bf16.mxu0 0
    %728 = vmatpush1.bf16.msra.mxu0 0
    %729 = vmatprep.subr.bf16.mxu0 0
    %730 = vmatpush1.bf16.msra.mxu0 0
    %731 = vmatprep.subr.bf16.mxu0 0
    %732 = vmatpush1.bf16.msra.mxu0 0
    %733 = vmatprep.subr.bf16.mxu0 0
    %734 = vmatpush1.bf16.msra.mxu0 0
    %735 = vmatprep.subr.bf16.mxu0 0
    %736 = vmatpush1.bf16.msra.mxu0 0
    %737 = vmatprep.subr.bf16.mxu0 0
    %738 = vmatpush1.bf16.msra.mxu0 0
    %739 = vmatprep.subr.bf16.mxu0 0
    %740 = vmatpush1.bf16.msra.mxu0 0
    %741 = vmatprep.subr.bf16.mxu0 0
    %742 = vmatpush1.bf16.msra.mxu0 0
    %743 = vmatprep.mubr.bf16.mxu0 0
    %744 = vmatmul.mubr.bf16.gmra.mrb[0].mxu0 %v370
    %v745 = vpop.f32.mrb[0].mxu0
    %v746 = vadd.f32 %v222, %v745
    %v747 = vpop.f32.mrb[0].mxu0
    %v748 = vadd.f32 %v223, %v747
    %v749 = vpop.f32.mrb[0].mxu0
    %v750 = vpop.f32.mrb[0].mxu0
    %751 = vdwg.mxu0
    %v752 = vld [vmem:[#allocation6] sm:$0xff]
    %v753 = vld [vmem:[#allocation6 + $0x8] sm:$0xff]
    %v756 = vlaneseq
    %v757 = vshrl.u32 %v756, 7
    %v758 = vsub.s32 0, %v757
    %v759 = vrot.slane %v752, %v758
    %v760 = vlaneseq
    %v761 = vshrl.u32 %v760, 7
    %v762 = vsub.s32 1, %v761
    %v763 = vrot.slane %v752, %v762
    %v764 = vlaneseq
    %v765 = vshrl.u32 %v764, 7
    %v766 = vsub.s32 2, %v765
    %v767 = vrot.slane %v752, %v766
    %v768 = vlaneseq
    %v769 = vshrl.u32 %v768, 7
    %v770 = vsub.s32 3, %v769
    %v771 = vrot.slane %v752, %v770
    %v772 = vlaneseq
    %v773 = vshrl.u32 %v772, 7
    %v774 = vsub.s32 4, %v773
    %v775 = vrot.slane %v752, %v774
    %v776 = vlaneseq
    %v777 = vshrl.u32 %v776, 7
    %v778 = vsub.s32 5, %v777
    %v779 = vrot.slane %v752, %v778
    %v780 = vlaneseq
    %v781 = vshrl.u32 %v780, 7
    %v782 = vsub.s32 6, %v781
    %v783 = vrot.slane %v752, %v782
    %v784 = vlaneseq
    %v785 = vshrl.u32 %v784, 7
    %v786 = vsub.s32 7, %v785
    %v787 = vrot.slane %v752, %v786
    %v788 = vlaneseq
    %v789 = vshrl.u32 %v788, 7
    %v790 = vsub.s32 0, %v789
    %v791 = vrot.slane %v753, %v790
    %v792 = vlaneseq
    %v793 = vshrl.u32 %v792, 7
    %v794 = vsub.s32 1, %v793
    %v795 = vrot.slane %v753, %v794
    %v796 = vlaneseq
    %v797 = vshrl.u32 %v796, 7
    %v798 = vsub.s32 2, %v797
    %v799 = vrot.slane %v753, %v798
    %v800 = vlaneseq
    %v801 = vshrl.u32 %v800, 7
    %v802 = vsub.s32 3, %v801
    %v803 = vrot.slane %v753, %v802
    %v804 = vlaneseq
    %v805 = vshrl.u32 %v804, 7
    %v806 = vsub.s32 4, %v805
    %v807 = vrot.slane %v753, %v806
    %v808 = vlaneseq
    %v809 = vshrl.u32 %v808, 7
    %v810 = vsub.s32 5, %v809
    %v811 = vrot.slane %v753, %v810
    %v812 = vlaneseq
    %v813 = vshrl.u32 %v812, 7
    %v814 = vsub.s32 6, %v813
    %v815 = vrot.slane %v753, %v814
    %v816 = vlaneseq
    %v817 = vshrl.u32 %v816, 7
    %v818 = vsub.s32 7, %v817
    %v819 = vrot.slane %v753, %v818
    %v836 = vadd.f32 %v459, %v759
    %v837 = vadd.f32 %v461, %v763
    %v838 = vadd.f32 %v500, %v767
    %v839 = vadd.f32 %v502, %v771
    %v840 = vadd.f32 %v541, %v775
    %v841 = vadd.f32 %v543, %v779
    %v842 = vadd.f32 %v582, %v783
    %v843 = vadd.f32 %v584, %v787
    %v844 = vadd.f32 %v623, %v791
    %v845 = vadd.f32 %v625, %v795
    %v846 = vadd.f32 %v664, %v799
    %v847 = vadd.f32 %v666, %v803
    %v848 = vadd.f32 %v705, %v807
    %v849 = vadd.f32 %v707, %v811
    %v850 = vadd.f32 %v746, %v815
    %v851 = vadd.f32 %v748, %v819
    %v852 = vmax.f32 %v836, 0.0
    %v853 = vmax.f32 %v837, 0.0
    %v854 = vmax.f32 %v838, 0.0
    %v855 = vmax.f32 %v839, 0.0
    %v856 = vmax.f32 %v840, 0.0
    %v857 = vmax.f32 %v841, 0.0
    %v858 = vmax.f32 %v842, 0.0
    %v859 = vmax.f32 %v843, 0.0
    %v860 = vmax.f32 %v844, 0.0
    %v861 = vmax.f32 %v845, 0.0
    %v862 = vmax.f32 %v846, 0.0
    %v863 = vmax.f32 %v847, 0.0
    %v864 = vmax.f32 %v848, 0.0
    %v865 = vmax.f32 %v849, 0.0
    %v866 = vmax.f32 %v850, 0.0
    %v867 = vmax.f32 %v851, 0.0
    %v868 = vpack.c.bf16 %v852, %v852
    %v869 = vpack.c.bf16 %v853, %v853
    %v870 = vpack.c.bf16 %v854, %v854
    %v871 = vpack.c.bf16 %v855, %v855
    %v872 = vpack.c.bf16 %v856, %v856
    %v873 = vpack.c.bf16 %v857, %v857
    %v874 = vpack.c.bf16 %v858, %v858
    %v875 = vpack.c.bf16 %v859, %v859
    %v876 = vpack.c.bf16 %v860, %v860
    %v877 = vpack.c.bf16 %v861, %v861
    %v878 = vpack.c.bf16 %v862, %v862
    %v879 = vpack.c.bf16 %v863, %v863
    %v880 = vpack.c.bf16 %v864, %v864
    %v881 = vpack.c.bf16 %v865, %v865
    %v882 = vpack.c.bf16 %v866, %v866
    %v883 = vpack.c.bf16 %v867, %v867
    %v884 = vld [vmem:[#allocation7] sm:$0xff]
    %v885 = vld [vmem:[#allocation7 + $0x8] sm:$0xff]
    %v886 = vld [vmem:[#allocation7 + $0x10] sm:$0xff]
    %v887 = vld [vmem:[#allocation7 + $0x18] sm:$0xff]
    %v888 = vld [vmem:[#allocation7 + $0x20] sm:$0xff]
    %v889 = vld [vmem:[#allocation7 + $0x28] sm:$0xff]
    %v890 = vld [vmem:[#allocation7 + $0x30] sm:$0xff]
    %v891 = vld [vmem:[#allocation7 + $0x38] sm:$0xff]
    %v892 = vld [vmem:[#allocation7 + $0x40] sm:$0xff]
    %v893 = vld [vmem:[#allocation7 + $0x48] sm:$0xff]
    %v894 = vld [vmem:[#allocation7 + $0x50] sm:$0xff]
    %v895 = vld [vmem:[#allocation7 + $0x58] sm:$0xff]
    %v896 = vld [vmem:[#allocation7 + $0x60] sm:$0xff]
    %v897 = vld [vmem:[#allocation7 + $0x68] sm:$0xff]
    %v898 = vld [vmem:[#allocation7 + $0x70] sm:$0xff]
    %v899 = vld [vmem:[#allocation7 + $0x78] sm:$0xff]
    %v900 = vld [vmem:[#allocation7 + $0x80] sm:$0xff]
    %v901 = vld [vmem:[#allocation7 + $0x88] sm:$0xff]
    %v902 = vld [vmem:[#allocation7 + $0x90] sm:$0xff]
    %v903 = vld [vmem:[#allocation7 + $0x98] sm:$0xff]
    %v904 = vld [vmem:[#allocation7 + $0xa0] sm:$0xff]
    %v905 = vld [vmem:[#allocation7 + $0xa8] sm:$0xff]
    %v906 = vld [vmem:[#allocation7 + $0xb0] sm:$0xff]
    %v907 = vld [vmem:[#allocation7 + $0xb8] sm:$0xff]
    %v908 = vld [vmem:[#allocation7 + $0xc0] sm:$0xff]
    %v909 = vld [vmem:[#allocation7 + $0xc8] sm:$0xff]
    %v910 = vld [vmem:[#allocation7 + $0xd0] sm:$0xff]
    %v911 = vld [vmem:[#allocation7 + $0xd8] sm:$0xff]
    %v912 = vld [vmem:[#allocation7 + $0xe0] sm:$0xff]
    %v913 = vld [vmem:[#allocation7 + $0xe8] sm:$0xff]
    %v914 = vld [vmem:[#allocation7 + $0xf0] sm:$0xff]
    %v915 = vld [vmem:[#allocation7 + $0xf8] sm:$0xff]
    %v916 = vld [vmem:[#allocation7 + $0x100] sm:$0xff]
    %v917 = vld [vmem:[#allocation7 + $0x108] sm:$0xff]
    %v918 = vld [vmem:[#allocation7 + $0x110] sm:$0xff]
    %v919 = vld [vmem:[#allocation7 + $0x118] sm:$0xff]
    %v920 = vld [vmem:[#allocation7 + $0x120] sm:$0xff]
    %v921 = vld [vmem:[#allocation7 + $0x128] sm:$0xff]
    %v922 = vld [vmem:[#allocation7 + $0x130] sm:$0xff]
    %v923 = vld [vmem:[#allocation7 + $0x138] sm:$0xff]
    %v924 = vld [vmem:[#allocation7 + $0x140] sm:$0xff]
    %v925 = vld [vmem:[#allocation7 + $0x148] sm:$0xff]
    %v926 = vld [vmem:[#allocation7 + $0x150] sm:$0xff]
    %v927 = vld [vmem:[#allocation7 + $0x158] sm:$0xff]
    %v928 = vld [vmem:[#allocation7 + $0x160] sm:$0xff]
    %v929 = vld [vmem:[#allocation7 + $0x168] sm:$0xff]
    %v930 = vld [vmem:[#allocation7 + $0x170] sm:$0xff]
    %v931 = vld [vmem:[#allocation7 + $0x178] sm:$0xff]
    %v932 = vld [vmem:[#allocation7 + $0x180] sm:$0xff]
    %v933 = vld [vmem:[#allocation7 + $0x188] sm:$0xff]
    %v934 = vld [vmem:[#allocation7 + $0x190] sm:$0xff]
    %v935 = vld [vmem:[#allocation7 + $0x198] sm:$0xff]
    %v936 = vld [vmem:[#allocation7 + $0x1a0] sm:$0xff]
    %v937 = vld [vmem:[#allocation7 + $0x1a8] sm:$0xff]
    %v938 = vld [vmem:[#allocation7 + $0x1b0] sm:$0xff]
    %v939 = vld [vmem:[#allocation7 + $0x1b8] sm:$0xff]
    %v940 = vld [vmem:[#allocation7 + $0x1c0] sm:$0xff]
    %v941 = vld [vmem:[#allocation7 + $0x1c8] sm:$0xff]
    %v942 = vld [vmem:[#allocation7 + $0x1d0] sm:$0xff]
    %v943 = vld [vmem:[#allocation7 + $0x1d8] sm:$0xff]
    %v944 = vld [vmem:[#allocation7 + $0x1e0] sm:$0xff]
    %v945 = vld [vmem:[#allocation7 + $0x1e8] sm:$0xff]
    %v946 = vld [vmem:[#allocation7 + $0x1f0] sm:$0xff]
    %v947 = vld [vmem:[#allocation7 + $0x1f8] sm:$0xff]
    %v948 = vld [vmem:[#allocation7 + $0x200] sm:$0xff]
    %v949 = vld [vmem:[#allocation7 + $0x208] sm:$0xff]
    %v950 = vld [vmem:[#allocation7 + $0x210] sm:$0xff]
    %v951 = vld [vmem:[#allocation7 + $0x218] sm:$0xff]
    %v952 = vld [vmem:[#allocation7 + $0x220] sm:$0xff]
    %v953 = vld [vmem:[#allocation7 + $0x228] sm:$0xff]
    %v954 = vld [vmem:[#allocation7 + $0x230] sm:$0xff]
    %v955 = vld [vmem:[#allocation7 + $0x238] sm:$0xff]
    %v956 = vld [vmem:[#allocation7 + $0x240] sm:$0xff]
    %v957 = vld [vmem:[#allocation7 + $0x248] sm:$0xff]
    %v958 = vld [vmem:[#allocation7 + $0x250] sm:$0xff]
    %v959 = vld [vmem:[#allocation7 + $0x258] sm:$0xff]
    %v960 = vld [vmem:[#allocation7 + $0x260] sm:$0xff]
    %v961 = vld [vmem:[#allocation7 + $0x268] sm:$0xff]
    %v962 = vld [vmem:[#allocation7 + $0x270] sm:$0xff]
    %v963 = vld [vmem:[#allocation7 + $0x278] sm:$0xff]
    %v964 = vld [vmem:[#allocation7 + $0x280] sm:$0xff]
    %v965 = vld [vmem:[#allocation7 + $0x288] sm:$0xff]
    %v966 = vld [vmem:[#allocation7 + $0x290] sm:$0xff]
    %v967 = vld [vmem:[#allocation7 + $0x298] sm:$0xff]
    %v968 = vld [vmem:[#allocation7 + $0x2a0] sm:$0xff]
    %v969 = vld [vmem:[#allocation7 + $0x2a8] sm:$0xff]
    %v970 = vld [vmem:[#allocation7 + $0x2b0] sm:$0xff]
    %v971 = vld [vmem:[#allocation7 + $0x2b8] sm:$0xff]
    %v972 = vld [vmem:[#allocation7 + $0x2c0] sm:$0xff]
    %v973 = vld [vmem:[#allocation7 + $0x2c8] sm:$0xff]
    %v974 = vld [vmem:[#allocation7 + $0x2d0] sm:$0xff]
    %v975 = vld [vmem:[#allocation7 + $0x2d8] sm:$0xff]
    %v976 = vld [vmem:[#allocation7 + $0x2e0] sm:$0xff]
    %v977 = vld [vmem:[#allocation7 + $0x2e8] sm:$0xff]
    %v978 = vld [vmem:[#allocation7 + $0x2f0] sm:$0xff]
    %v979 = vld [vmem:[#allocation7 + $0x2f8] sm:$0xff]
    %v980 = vld [vmem:[#allocation7 + $0x300] sm:$0xff]
    %v981 = vld [vmem:[#allocation7 + $0x308] sm:$0xff]
    %v982 = vld [vmem:[#allocation7 + $0x310] sm:$0xff]
    %v983 = vld [vmem:[#allocation7 + $0x318] sm:$0xff]
    %v984 = vld [vmem:[#allocation7 + $0x320] sm:$0xff]
    %v985 = vld [vmem:[#allocation7 + $0x328] sm:$0xff]
    %v986 = vld [vmem:[#allocation7 + $0x330] sm:$0xff]
    %v987 = vld [vmem:[#allocation7 + $0x338] sm:$0xff]
    %v988 = vld [vmem:[#allocation7 + $0x340] sm:$0xff]
    %v989 = vld [vmem:[#allocation7 + $0x348] sm:$0xff]
    %v990 = vld [vmem:[#allocation7 + $0x350] sm:$0xff]
    %v991 = vld [vmem:[#allocation7 + $0x358] sm:$0xff]
    %v992 = vld [vmem:[#allocation7 + $0x360] sm:$0xff]
    %v993 = vld [vmem:[#allocation7 + $0x368] sm:$0xff]
    %v994 = vld [vmem:[#allocation7 + $0x370] sm:$0xff]
    %v995 = vld [vmem:[#allocation7 + $0x378] sm:$0xff]
    %v996 = vld [vmem:[#allocation7 + $0x380] sm:$0xff]
    %v997 = vld [vmem:[#allocation7 + $0x388] sm:$0xff]
    %v998 = vld [vmem:[#allocation7 + $0x390] sm:$0xff]
    %v999 = vld [vmem:[#allocation7 + $0x398] sm:$0xff]
    %v1000 = vld [vmem:[#allocation7 + $0x3a0] sm:$0xff]
    %v1001 = vld [vmem:[#allocation7 + $0x3a8] sm:$0xff]
    %v1002 = vld [vmem:[#allocation7 + $0x3b0] sm:$0xff]
    %v1003 = vld [vmem:[#allocation7 + $0x3b8] sm:$0xff]
    %v1004 = vld [vmem:[#allocation7 + $0x3c0] sm:$0xff]
    %v1005 = vld [vmem:[#allocation7 + $0x3c8] sm:$0xff]
    %v1006 = vld [vmem:[#allocation7 + $0x3d0] sm:$0xff]
    %v1007 = vld [vmem:[#allocation7 + $0x3d8] sm:$0xff]
    %v1008 = vld [vmem:[#allocation7 + $0x3e0] sm:$0xff]
    %v1009 = vld [vmem:[#allocation7 + $0x3e8] sm:$0xff]
    %v1010 = vld [vmem:[#allocation7 + $0x3f0] sm:$0xff]
    %v1011 = vld [vmem:[#allocation7 + $0x3f8] sm:$0xff]
    %v1012 = vld [vmem:[#allocation7 + $0x400] sm:$0xff]
    %v1013 = vld [vmem:[#allocation7 + $0x408] sm:$0xff]
    %v1014 = vld [vmem:[#allocation7 + $0x410] sm:$0xff]
    %v1015 = vld [vmem:[#allocation7 + $0x418] sm:$0xff]
    %v1016 = vld [vmem:[#allocation7 + $0x420] sm:$0xff]
    %v1017 = vld [vmem:[#allocation7 + $0x428] sm:$0xff]
    %v1018 = vld [vmem:[#allocation7 + $0x430] sm:$0xff]
    %v1019 = vld [vmem:[#allocation7 + $0x438] sm:$0xff]
    %v1020 = vld [vmem:[#allocation7 + $0x440] sm:$0xff]
    %v1021 = vld [vmem:[#allocation7 + $0x448] sm:$0xff]
    %v1022 = vld [vmem:[#allocation7 + $0x450] sm:$0xff]
    %v1023 = vld [vmem:[#allocation7 + $0x458] sm:$0xff]
    %v1024 = vld [vmem:[#allocation7 + $0x460] sm:$0xff]
    %v1025 = vld [vmem:[#allocation7 + $0x468] sm:$0xff]
    %v1026 = vld [vmem:[#allocation7 + $0x470] sm:$0xff]
    %v1027 = vld [vmem:[#allocation7 + $0x478] sm:$0xff]
    %v1028 = vld [vmem:[#allocation7 + $0x480] sm:$0xff]
    %v1029 = vld [vmem:[#allocation7 + $0x488] sm:$0xff]
    %v1030 = vld [vmem:[#allocation7 + $0x490] sm:$0xff]
    %v1031 = vld [vmem:[#allocation7 + $0x498] sm:$0xff]
    %v1032 = vld [vmem:[#allocation7 + $0x4a0] sm:$0xff]
    %v1033 = vld [vmem:[#allocation7 + $0x4a8] sm:$0xff]
    %v1034 = vld [vmem:[#allocation7 + $0x4b0] sm:$0xff]
    %v1035 = vld [vmem:[#allocation7 + $0x4b8] sm:$0xff]
    %v1036 = vld [vmem:[#allocation7 + $0x4c0] sm:$0xff]
    %v1037 = vld [vmem:[#allocation7 + $0x4c8] sm:$0xff]
    %v1038 = vld [vmem:[#allocation7 + $0x4d0] sm:$0xff]
    %v1039 = vld [vmem:[#allocation7 + $0x4d8] sm:$0xff]
    %v1040 = vld [vmem:[#allocation7 + $0x4e0] sm:$0xff]
    %v1041 = vld [vmem:[#allocation7 + $0x4e8] sm:$0xff]
    %v1042 = vld [vmem:[#allocation7 + $0x4f0] sm:$0xff]
    %v1043 = vld [vmem:[#allocation7 + $0x4f8] sm:$0xff]
    %v1044 = vld [vmem:[#allocation7 + $0x500] sm:$0xff]
    %v1045 = vld [vmem:[#allocation7 + $0x508] sm:$0xff]
    %v1046 = vld [vmem:[#allocation7 + $0x510] sm:$0xff]
    %v1047 = vld [vmem:[#allocation7 + $0x518] sm:$0xff]
    %v1048 = vld [vmem:[#allocation7 + $0x520] sm:$0xff]
    %v1049 = vld [vmem:[#allocation7 + $0x528] sm:$0xff]
    %v1050 = vld [vmem:[#allocation7 + $0x530] sm:$0xff]
    %v1051 = vld [vmem:[#allocation7 + $0x538] sm:$0xff]
    %v1052 = vld [vmem:[#allocation7 + $0x540] sm:$0xff]
    %v1053 = vld [vmem:[#allocation7 + $0x548] sm:$0xff]
    %v1054 = vld [vmem:[#allocation7 + $0x550] sm:$0xff]
    %v1055 = vld [vmem:[#allocation7 + $0x558] sm:$0xff]
    %v1056 = vld [vmem:[#allocation7 + $0x560] sm:$0xff]
    %v1057 = vld [vmem:[#allocation7 + $0x568] sm:$0xff]
    %v1058 = vld [vmem:[#allocation7 + $0x570] sm:$0xff]
    %v1059 = vld [vmem:[#allocation7 + $0x578] sm:$0xff]
    %v1060 = vld [vmem:[#allocation7 + $0x580] sm:$0xff]
    %v1061 = vld [vmem:[#allocation7 + $0x588] sm:$0xff]
    %v1062 = vld [vmem:[#allocation7 + $0x590] sm:$0xff]
    %v1063 = vld [vmem:[#allocation7 + $0x598] sm:$0xff]
    %v1064 = vld [vmem:[#allocation7 + $0x5a0] sm:$0xff]
    %v1065 = vld [vmem:[#allocation7 + $0x5a8] sm:$0xff]
    %v1066 = vld [vmem:[#allocation7 + $0x5b0] sm:$0xff]
    %v1067 = vld [vmem:[#allocation7 + $0x5b8] sm:$0xff]
    %v1068 = vld [vmem:[#allocation7 + $0x5c0] sm:$0xff]
    %v1069 = vld [vmem:[#allocation7 + $0x5c8] sm:$0xff]
    %v1070 = vld [vmem:[#allocation7 + $0x5d0] sm:$0xff]
    %v1071 = vld [vmem:[#allocation7 + $0x5d8] sm:$0xff]
    %v1072 = vld [vmem:[#allocation7 + $0x5e0] sm:$0xff]
    %v1073 = vld [vmem:[#allocation7 + $0x5e8] sm:$0xff]
    %v1074 = vld [vmem:[#allocation7 + $0x5f0] sm:$0xff]
    %v1075 = vld [vmem:[#allocation7 + $0x5f8] sm:$0xff]
    %v1076 = vld [vmem:[#allocation7 + $0x600] sm:$0xff]
    %v1077 = vld [vmem:[#allocation7 + $0x608] sm:$0xff]
    %v1078 = vld [vmem:[#allocation7 + $0x610] sm:$0xff]
    %v1079 = vld [vmem:[#allocation7 + $0x618] sm:$0xff]
    %v1080 = vld [vmem:[#allocation7 + $0x620] sm:$0xff]
    %v1081 = vld [vmem:[#allocation7 + $0x628] sm:$0xff]
    %v1082 = vld [vmem:[#allocation7 + $0x630] sm:$0xff]
    %v1083 = vld [vmem:[#allocation7 + $0x638] sm:$0xff]
    %v1084 = vld [vmem:[#allocation7 + $0x640] sm:$0xff]
    %v1085 = vld [vmem:[#allocation7 + $0x648] sm:$0xff]
    %v1086 = vld [vmem:[#allocation7 + $0x650] sm:$0xff]
    %v1087 = vld [vmem:[#allocation7 + $0x658] sm:$0xff]
    %v1088 = vld [vmem:[#allocation7 + $0x660] sm:$0xff]
    %v1089 = vld [vmem:[#allocation7 + $0x668] sm:$0xff]
    %v1090 = vld [vmem:[#allocation7 + $0x670] sm:$0xff]
    %v1091 = vld [vmem:[#allocation7 + $0x678] sm:$0xff]
    %v1092 = vld [vmem:[#allocation7 + $0x680] sm:$0xff]
    %v1093 = vld [vmem:[#allocation7 + $0x688] sm:$0xff]
    %v1094 = vld [vmem:[#allocation7 + $0x690] sm:$0xff]
    %v1095 = vld [vmem:[#allocation7 + $0x698] sm:$0xff]
    %v1096 = vld [vmem:[#allocation7 + $0x6a0] sm:$0xff]
    %v1097 = vld [vmem:[#allocation7 + $0x6a8] sm:$0xff]
    %v1098 = vld [vmem:[#allocation7 + $0x6b0] sm:$0xff]
    %v1099 = vld [vmem:[#allocation7 + $0x6b8] sm:$0xff]
    %v1100 = vld [vmem:[#allocation7 + $0x6c0] sm:$0xff]
    %v1101 = vld [vmem:[#allocation7 + $0x6c8] sm:$0xff]
    %v1102 = vld [vmem:[#allocation7 + $0x6d0] sm:$0xff]
    %v1103 = vld [vmem:[#allocation7 + $0x6d8] sm:$0xff]
    %v1104 = vld [vmem:[#allocation7 + $0x6e0] sm:$0xff]
    %v1105 = vld [vmem:[#allocation7 + $0x6e8] sm:$0xff]
    %v1106 = vld [vmem:[#allocation7 + $0x6f0] sm:$0xff]
    %v1107 = vld [vmem:[#allocation7 + $0x6f8] sm:$0xff]
    %v1108 = vld [vmem:[#allocation7 + $0x700] sm:$0xff]
    %v1109 = vld [vmem:[#allocation7 + $0x708] sm:$0xff]
    %v1110 = vld [vmem:[#allocation7 + $0x710] sm:$0xff]
    %v1111 = vld [vmem:[#allocation7 + $0x718] sm:$0xff]
    %v1112 = vld [vmem:[#allocation7 + $0x720] sm:$0xff]
    %v1113 = vld [vmem:[#allocation7 + $0x728] sm:$0xff]
    %v1114 = vld [vmem:[#allocation7 + $0x730] sm:$0xff]
    %v1115 = vld [vmem:[#allocation7 + $0x738] sm:$0xff]
    %v1116 = vld [vmem:[#allocation7 + $0x740] sm:$0xff]
    %v1117 = vld [vmem:[#allocation7 + $0x748] sm:$0xff]
    %v1118 = vld [vmem:[#allocation7 + $0x750] sm:$0xff]
    %v1119 = vld [vmem:[#allocation7 + $0x758] sm:$0xff]
    %v1120 = vld [vmem:[#allocation7 + $0x760] sm:$0xff]
    %v1121 = vld [vmem:[#allocation7 + $0x768] sm:$0xff]
    %v1122 = vld [vmem:[#allocation7 + $0x770] sm:$0xff]
    %v1123 = vld [vmem:[#allocation7 + $0x778] sm:$0xff]
    %v1124 = vld [vmem:[#allocation7 + $0x780] sm:$0xff]
    %v1125 = vld [vmem:[#allocation7 + $0x788] sm:$0xff]
    %v1126 = vld [vmem:[#allocation7 + $0x790] sm:$0xff]
    %v1127 = vld [vmem:[#allocation7 + $0x798] sm:$0xff]
    %v1128 = vld [vmem:[#allocation7 + $0x7a0] sm:$0xff]
    %v1129 = vld [vmem:[#allocation7 + $0x7a8] sm:$0xff]
    %v1130 = vld [vmem:[#allocation7 + $0x7b0] sm:$0xff]
    %v1131 = vld [vmem:[#allocation7 + $0x7b8] sm:$0xff]
    %v1132 = vld [vmem:[#allocation7 + $0x7c0] sm:$0xff]
    %v1133 = vld [vmem:[#allocation7 + $0x7c8] sm:$0xff]
    %v1134 = vld [vmem:[#allocation7 + $0x7d0] sm:$0xff]
    %v1135 = vld [vmem:[#allocation7 + $0x7d8] sm:$0xff]
    %v1136 = vld [vmem:[#allocation7 + $0x7e0] sm:$0xff]
    %v1137 = vld [vmem:[#allocation7 + $0x7e8] sm:$0xff]
    %v1138 = vld [vmem:[#allocation7 + $0x7f0] sm:$0xff]
    %v1139 = vld [vmem:[#allocation7 + $0x7f8] sm:$0xff]
    %v1140 = vld [vmem:[%s6] sm:$0x3]
    %v1142 = vlaneseq
    %v1143 = vshrl.u32 %v1142, 7
    %v1144 = vsub.s32 0, %v1143
    %v1145 = vrot.slane %v1140, %v1144
    %v1146 = vlaneseq
    %v1147 = vshrl.u32 %v1146, 7
    %v1148 = vsub.s32 1, %v1147
    %v1149 = vrot.slane %v1140, %v1148
    %v1408 = vunpack.c.l.b16 %v884
    %v1409 = vunpack.c.h.b16 %v884
    %v1410 = vunpack.c.l.b16 %v885
    %v1411 = vunpack.c.h.b16 %v885
    %v1412 = vunpack.c.l.b16 %v886
    %v1413 = vunpack.c.h.b16 %v886
    %v1414 = vunpack.c.l.b16 %v887
    %v1415 = vunpack.c.h.b16 %v887
    %v1416 = vunpack.c.l.b16 %v888
    %v1417 = vunpack.c.h.b16 %v888
    %v1418 = vunpack.c.l.b16 %v889
    %v1419 = vunpack.c.h.b16 %v889
    %v1420 = vunpack.c.l.b16 %v890
    %v1421 = vunpack.c.h.b16 %v890
    %v1422 = vunpack.c.l.b16 %v891
    %v1423 = vunpack.c.h.b16 %v891
    %v1424 = vunpack.c.l.b16 %v892
    %v1425 = vunpack.c.h.b16 %v892
    %v1426 = vunpack.c.l.b16 %v893
    %v1427 = vunpack.c.h.b16 %v893
    %v1428 = vunpack.c.l.b16 %v894
    %v1429 = vunpack.c.h.b16 %v894
    %v1430 = vunpack.c.l.b16 %v895
    %v1431 = vunpack.c.h.b16 %v895
    %v1432 = vunpack.c.l.b16 %v896
    %v1433 = vunpack.c.h.b16 %v896
    %v1434 = vunpack.c.l.b16 %v897
    %v1435 = vunpack.c.h.b16 %v897
    %v1436 = vunpack.c.l.b16 %v898
    %v1437 = vunpack.c.h.b16 %v898
    %v1438 = vunpack.c.l.b16 %v899
    %v1439 = vunpack.c.h.b16 %v899
    %v1440 = vunpack.c.l.b16 %v900
    %v1441 = vunpack.c.h.b16 %v900
    %v1442 = vunpack.c.l.b16 %v901
    %v1443 = vunpack.c.h.b16 %v901
    %v1444 = vunpack.c.l.b16 %v902
    %v1445 = vunpack.c.h.b16 %v902
    %v1446 = vunpack.c.l.b16 %v903
    %v1447 = vunpack.c.h.b16 %v903
    %v1448 = vunpack.c.l.b16 %v904
    %v1449 = vunpack.c.h.b16 %v904
    %v1450 = vunpack.c.l.b16 %v905
    %v1451 = vunpack.c.h.b16 %v905
    %v1452 = vunpack.c.l.b16 %v906
    %v1453 = vunpack.c.h.b16 %v906
    %v1454 = vunpack.c.l.b16 %v907
    %v1455 = vunpack.c.h.b16 %v907
    %v1456 = vunpack.c.l.b16 %v908
    %v1457 = vunpack.c.h.b16 %v908
    %v1458 = vunpack.c.l.b16 %v909
    %v1459 = vunpack.c.h.b16 %v909
    %v1460 = vunpack.c.l.b16 %v910
    %v1461 = vunpack.c.h.b16 %v910
    %v1462 = vunpack.c.l.b16 %v911
    %v1463 = vunpack.c.h.b16 %v911
    %v1464 = vunpack.c.l.b16 %v912
    %v1465 = vunpack.c.h.b16 %v912
    %v1466 = vunpack.c.l.b16 %v913
    %v1467 = vunpack.c.h.b16 %v913
    %v1468 = vunpack.c.l.b16 %v914
    %v1469 = vunpack.c.h.b16 %v914
    %v1470 = vunpack.c.l.b16 %v915
    %v1471 = vunpack.c.h.b16 %v915
    %v1472 = vunpack.c.l.b16 %v916
    %v1473 = vunpack.c.h.b16 %v916
    %v1474 = vunpack.c.l.b16 %v917
    %v1475 = vunpack.c.h.b16 %v917
    %v1476 = vunpack.c.l.b16 %v918
    %v1477 = vunpack.c.h.b16 %v918
    %v1478 = vunpack.c.l.b16 %v919
    %v1479 = vunpack.c.h.b16 %v919
    %v1480 = vunpack.c.l.b16 %v920
    %v1481 = vunpack.c.h.b16 %v920
    %v1482 = vunpack.c.l.b16 %v921
    %v1483 = vunpack.c.h.b16 %v921
    %v1484 = vunpack.c.l.b16 %v922
    %v1485 = vunpack.c.h.b16 %v922
    %v1486 = vunpack.c.l.b16 %v923
    %v1487 = vunpack.c.h.b16 %v923
    %v1488 = vunpack.c.l.b16 %v924
    %v1489 = vunpack.c.h.b16 %v924
    %v1490 = vunpack.c.l.b16 %v925
    %v1491 = vunpack.c.h.b16 %v925
    %v1492 = vunpack.c.l.b16 %v926
    %v1493 = vunpack.c.h.b16 %v926
    %v1494 = vunpack.c.l.b16 %v927
    %v1495 = vunpack.c.h.b16 %v927
    %v1496 = vunpack.c.l.b16 %v928
    %v1497 = vunpack.c.h.b16 %v928
    %v1498 = vunpack.c.l.b16 %v929
    %v1499 = vunpack.c.h.b16 %v929
    %v1500 = vunpack.c.l.b16 %v930
    %v1501 = vunpack.c.h.b16 %v930
    %v1502 = vunpack.c.l.b16 %v931
    %v1503 = vunpack.c.h.b16 %v931
    %v1504 = vunpack.c.l.b16 %v932
    %v1505 = vunpack.c.h.b16 %v932
    %v1506 = vunpack.c.l.b16 %v933
    %v1507 = vunpack.c.h.b16 %v933
    %v1508 = vunpack.c.l.b16 %v934
    %v1509 = vunpack.c.h.b16 %v934
    %v1510 = vunpack.c.l.b16 %v935
    %v1511 = vunpack.c.h.b16 %v935
    %v1512 = vunpack.c.l.b16 %v936
    %v1513 = vunpack.c.h.b16 %v936
    %v1514 = vunpack.c.l.b16 %v937
    %v1515 = vunpack.c.h.b16 %v937
    %v1516 = vunpack.c.l.b16 %v938
    %v1517 = vunpack.c.h.b16 %v938
    %v1518 = vunpack.c.l.b16 %v939
    %v1519 = vunpack.c.h.b16 %v939
    %v1520 = vunpack.c.l.b16 %v940
    %v1521 = vunpack.c.h.b16 %v940
    %v1522 = vunpack.c.l.b16 %v941
    %v1523 = vunpack.c.h.b16 %v941
    %v1524 = vunpack.c.l.b16 %v942
    %v1525 = vunpack.c.h.b16 %v942
    %v1526 = vunpack.c.l.b16 %v943
    %v1527 = vunpack.c.h.b16 %v943
    %v1528 = vunpack.c.l.b16 %v944
    %v1529 = vunpack.c.h.b16 %v944
    %v1530 = vunpack.c.l.b16 %v945
    %v1531 = vunpack.c.h.b16 %v945
    %v1532 = vunpack.c.l.b16 %v946
    %v1533 = vunpack.c.h.b16 %v946
    %v1534 = vunpack.c.l.b16 %v947
    %v1535 = vunpack.c.h.b16 %v947
    %v1536 = vunpack.c.l.b16 %v948
    %v1537 = vunpack.c.h.b16 %v948
    %v1538 = vunpack.c.l.b16 %v949
    %v1539 = vunpack.c.h.b16 %v949
    %v1540 = vunpack.c.l.b16 %v950
    %v1541 = vunpack.c.h.b16 %v950
    %v1542 = vunpack.c.l.b16 %v951
    %v1543 = vunpack.c.h.b16 %v951
    %v1544 = vunpack.c.l.b16 %v952
    %v1545 = vunpack.c.h.b16 %v952
    %v1546 = vunpack.c.l.b16 %v953
    %v1547 = vunpack.c.h.b16 %v953
    %v1548 = vunpack.c.l.b16 %v954
    %v1549 = vunpack.c.h.b16 %v954
    %v1550 = vunpack.c.l.b16 %v955
    %v1551 = vunpack.c.h.b16 %v955
    %v1552 = vunpack.c.l.b16 %v956
    %v1553 = vunpack.c.h.b16 %v956
    %v1554 = vunpack.c.l.b16 %v957
    %v1555 = vunpack.c.h.b16 %v957
    %v1556 = vunpack.c.l.b16 %v958
    %v1557 = vunpack.c.h.b16 %v958
    %v1558 = vunpack.c.l.b16 %v959
    %v1559 = vunpack.c.h.b16 %v959
    %v1560 = vunpack.c.l.b16 %v960
    %v1561 = vunpack.c.h.b16 %v960
    %v1562 = vunpack.c.l.b16 %v961
    %v1563 = vunpack.c.h.b16 %v961
    %v1564 = vunpack.c.l.b16 %v962
    %v1565 = vunpack.c.h.b16 %v962
    %v1566 = vunpack.c.l.b16 %v963
    %v1567 = vunpack.c.h.b16 %v963
    %v1568 = vunpack.c.l.b16 %v964
    %v1569 = vunpack.c.h.b16 %v964
    %v1570 = vunpack.c.l.b16 %v965
    %v1571 = vunpack.c.h.b16 %v965
    %v1572 = vunpack.c.l.b16 %v966
    %v1573 = vunpack.c.h.b16 %v966
    %v1574 = vunpack.c.l.b16 %v967
    %v1575 = vunpack.c.h.b16 %v967
    %v1576 = vunpack.c.l.b16 %v968
    %v1577 = vunpack.c.h.b16 %v968
    %v1578 = vunpack.c.l.b16 %v969
    %v1579 = vunpack.c.h.b16 %v969
    %v1580 = vunpack.c.l.b16 %v970
    %v1581 = vunpack.c.h.b16 %v970
    %v1582 = vunpack.c.l.b16 %v971
    %v1583 = vunpack.c.h.b16 %v971
    %v1584 = vunpack.c.l.b16 %v972
    %v1585 = vunpack.c.h.b16 %v972
    %v1586 = vunpack.c.l.b16 %v973
    %v1587 = vunpack.c.h.b16 %v973
    %v1588 = vunpack.c.l.b16 %v974
    %v1589 = vunpack.c.h.b16 %v974
    %v1590 = vunpack.c.l.b16 %v975
    %v1591 = vunpack.c.h.b16 %v975
    %v1592 = vunpack.c.l.b16 %v976
    %v1593 = vunpack.c.h.b16 %v976
    %v1594 = vunpack.c.l.b16 %v977
    %v1595 = vunpack.c.h.b16 %v977
    %v1596 = vunpack.c.l.b16 %v978
    %v1597 = vunpack.c.h.b16 %v978
    %v1598 = vunpack.c.l.b16 %v979
    %v1599 = vunpack.c.h.b16 %v979
    %v1600 = vunpack.c.l.b16 %v980
    %v1601 = vunpack.c.h.b16 %v980
    %v1602 = vunpack.c.l.b16 %v981
    %v1603 = vunpack.c.h.b16 %v981
    %v1604 = vunpack.c.l.b16 %v982
    %v1605 = vunpack.c.h.b16 %v982
    %v1606 = vunpack.c.l.b16 %v983
    %v1607 = vunpack.c.h.b16 %v983
    %v1608 = vunpack.c.l.b16 %v984
    %v1609 = vunpack.c.h.b16 %v984
    %v1610 = vunpack.c.l.b16 %v985
    %v1611 = vunpack.c.h.b16 %v985
    %v1612 = vunpack.c.l.b16 %v986
    %v1613 = vunpack.c.h.b16 %v986
    %v1614 = vunpack.c.l.b16 %v987
    %v1615 = vunpack.c.h.b16 %v987
    %v1616 = vunpack.c.l.b16 %v988
    %v1617 = vunpack.c.h.b16 %v988
    %v1618 = vunpack.c.l.b16 %v989
    %v1619 = vunpack.c.h.b16 %v989
    %v1620 = vunpack.c.l.b16 %v990
    %v1621 = vunpack.c.h.b16 %v990
    %v1622 = vunpack.c.l.b16 %v991
    %v1623 = vunpack.c.h.b16 %v991
    %v1624 = vunpack.c.l.b16 %v992
    %v1625 = vunpack.c.h.b16 %v992
    %v1626 = vunpack.c.l.b16 %v993
    %v1627 = vunpack.c.h.b16 %v993
    %v1628 = vunpack.c.l.b16 %v994
    %v1629 = vunpack.c.h.b16 %v994
    %v1630 = vunpack.c.l.b16 %v995
    %v1631 = vunpack.c.h.b16 %v995
    %v1632 = vunpack.c.l.b16 %v996
    %v1633 = vunpack.c.h.b16 %v996
    %v1634 = vunpack.c.l.b16 %v997
    %v1635 = vunpack.c.h.b16 %v997
    %v1636 = vunpack.c.l.b16 %v998
    %v1637 = vunpack.c.h.b16 %v998
    %v1638 = vunpack.c.l.b16 %v999
    %v1639 = vunpack.c.h.b16 %v999
    %v1640 = vunpack.c.l.b16 %v1000
    %v1641 = vunpack.c.h.b16 %v1000
    %v1642 = vunpack.c.l.b16 %v1001
    %v1643 = vunpack.c.h.b16 %v1001
    %v1644 = vunpack.c.l.b16 %v1002
    %v1645 = vunpack.c.h.b16 %v1002
    %v1646 = vunpack.c.l.b16 %v1003
    %v1647 = vunpack.c.h.b16 %v1003
    %v1648 = vunpack.c.l.b16 %v1004
    %v1649 = vunpack.c.h.b16 %v1004
    %v1650 = vunpack.c.l.b16 %v1005
    %v1651 = vunpack.c.h.b16 %v1005
    %v1652 = vunpack.c.l.b16 %v1006
    %v1653 = vunpack.c.h.b16 %v1006
    %v1654 = vunpack.c.l.b16 %v1007
    %v1655 = vunpack.c.h.b16 %v1007
    %v1656 = vunpack.c.l.b16 %v1008
    %v1657 = vunpack.c.h.b16 %v1008
    %v1658 = vunpack.c.l.b16 %v1009
    %v1659 = vunpack.c.h.b16 %v1009
    %v1660 = vunpack.c.l.b16 %v1010
    %v1661 = vunpack.c.h.b16 %v1010
    %v1662 = vunpack.c.l.b16 %v1011
    %v1663 = vunpack.c.h.b16 %v1011
    %v1664 = vunpack.c.l.b16 %v1012
    %v1665 = vunpack.c.h.b16 %v1012
    %v1666 = vunpack.c.l.b16 %v1013
    %v1667 = vunpack.c.h.b16 %v1013
    %v1668 = vunpack.c.l.b16 %v1014
    %v1669 = vunpack.c.h.b16 %v1014
    %v1670 = vunpack.c.l.b16 %v1015
    %v1671 = vunpack.c.h.b16 %v1015
    %v1672 = vunpack.c.l.b16 %v1016
    %v1673 = vunpack.c.h.b16 %v1016
    %v1674 = vunpack.c.l.b16 %v1017
    %v1675 = vunpack.c.h.b16 %v1017
    %v1676 = vunpack.c.l.b16 %v1018
    %v1677 = vunpack.c.h.b16 %v1018
    %v1678 = vunpack.c.l.b16 %v1019
    %v1679 = vunpack.c.h.b16 %v1019
    %v1680 = vunpack.c.l.b16 %v1020
    %v1681 = vunpack.c.h.b16 %v1020
    %v1682 = vunpack.c.l.b16 %v1021
    %v1683 = vunpack.c.h.b16 %v1021
    %v1684 = vunpack.c.l.b16 %v1022
    %v1685 = vunpack.c.h.b16 %v1022
    %v1686 = vunpack.c.l.b16 %v1023
    %v1687 = vunpack.c.h.b16 %v1023
    %v1688 = vunpack.c.l.b16 %v1024
    %v1689 = vunpack.c.h.b16 %v1024
    %v1690 = vunpack.c.l.b16 %v1025
    %v1691 = vunpack.c.h.b16 %v1025
    %v1692 = vunpack.c.l.b16 %v1026
    %v1693 = vunpack.c.h.b16 %v1026
    %v1694 = vunpack.c.l.b16 %v1027
    %v1695 = vunpack.c.h.b16 %v1027
    %v1696 = vunpack.c.l.b16 %v1028
    %v1697 = vunpack.c.h.b16 %v1028
    %v1698 = vunpack.c.l.b16 %v1029
    %v1699 = vunpack.c.h.b16 %v1029
    %v1700 = vunpack.c.l.b16 %v1030
    %v1701 = vunpack.c.h.b16 %v1030
    %v1702 = vunpack.c.l.b16 %v1031
    %v1703 = vunpack.c.h.b16 %v1031
    %v1704 = vunpack.c.l.b16 %v1032
    %v1705 = vunpack.c.h.b16 %v1032
    %v1706 = vunpack.c.l.b16 %v1033
    %v1707 = vunpack.c.h.b16 %v1033
    %v1708 = vunpack.c.l.b16 %v1034
    %v1709 = vunpack.c.h.b16 %v1034
    %v1710 = vunpack.c.l.b16 %v1035
    %v1711 = vunpack.c.h.b16 %v1035
    %v1712 = vunpack.c.l.b16 %v1036
    %v1713 = vunpack.c.h.b16 %v1036
    %v1714 = vunpack.c.l.b16 %v1037
    %v1715 = vunpack.c.h.b16 %v1037
    %v1716 = vunpack.c.l.b16 %v1038
    %v1717 = vunpack.c.h.b16 %v1038
    %v1718 = vunpack.c.l.b16 %v1039
    %v1719 = vunpack.c.h.b16 %v1039
    %v1720 = vunpack.c.l.b16 %v1040
    %v1721 = vunpack.c.h.b16 %v1040
    %v1722 = vunpack.c.l.b16 %v1041
    %v1723 = vunpack.c.h.b16 %v1041
    %v1724 = vunpack.c.l.b16 %v1042
    %v1725 = vunpack.c.h.b16 %v1042
    %v1726 = vunpack.c.l.b16 %v1043
    %v1727 = vunpack.c.h.b16 %v1043
    %v1728 = vunpack.c.l.b16 %v1044
    %v1729 = vunpack.c.h.b16 %v1044
    %v1730 = vunpack.c.l.b16 %v1045
    %v1731 = vunpack.c.h.b16 %v1045
    %v1732 = vunpack.c.l.b16 %v1046
    %v1733 = vunpack.c.h.b16 %v1046
    %v1734 = vunpack.c.l.b16 %v1047
    %v1735 = vunpack.c.h.b16 %v1047
    %v1736 = vunpack.c.l.b16 %v1048
    %v1737 = vunpack.c.h.b16 %v1048
    %v1738 = vunpack.c.l.b16 %v1049
    %v1739 = vunpack.c.h.b16 %v1049
    %v1740 = vunpack.c.l.b16 %v1050
    %v1741 = vunpack.c.h.b16 %v1050
    %v1742 = vunpack.c.l.b16 %v1051
    %v1743 = vunpack.c.h.b16 %v1051
    %v1744 = vunpack.c.l.b16 %v1052
    %v1745 = vunpack.c.h.b16 %v1052
    %v1746 = vunpack.c.l.b16 %v1053
    %v1747 = vunpack.c.h.b16 %v1053
    %v1748 = vunpack.c.l.b16 %v1054
    %v1749 = vunpack.c.h.b16 %v1054
    %v1750 = vunpack.c.l.b16 %v1055
    %v1751 = vunpack.c.h.b16 %v1055
    %v1752 = vunpack.c.l.b16 %v1056
    %v1753 = vunpack.c.h.b16 %v1056
    %v1754 = vunpack.c.l.b16 %v1057
    %v1755 = vunpack.c.h.b16 %v1057
    %v1756 = vunpack.c.l.b16 %v1058
    %v1757 = vunpack.c.h.b16 %v1058
    %v1758 = vunpack.c.l.b16 %v1059
    %v1759 = vunpack.c.h.b16 %v1059
    %v1760 = vunpack.c.l.b16 %v1060
    %v1761 = vunpack.c.h.b16 %v1060
    %v1762 = vunpack.c.l.b16 %v1061
    %v1763 = vunpack.c.h.b16 %v1061
    %v1764 = vunpack.c.l.b16 %v1062
    %v1765 = vunpack.c.h.b16 %v1062
    %v1766 = vunpack.c.l.b16 %v1063
    %v1767 = vunpack.c.h.b16 %v1063
    %v1768 = vunpack.c.l.b16 %v1064
    %v1769 = vunpack.c.h.b16 %v1064
    %v1770 = vunpack.c.l.b16 %v1065
    %v1771 = vunpack.c.h.b16 %v1065
    %v1772 = vunpack.c.l.b16 %v1066
    %v1773 = vunpack.c.h.b16 %v1066
    %v1774 = vunpack.c.l.b16 %v1067
    %v1775 = vunpack.c.h.b16 %v1067
    %v1776 = vunpack.c.l.b16 %v1068
    %v1777 = vunpack.c.h.b16 %v1068
    %v1778 = vunpack.c.l.b16 %v1069
    %v1779 = vunpack.c.h.b16 %v1069
    %v1780 = vunpack.c.l.b16 %v1070
    %v1781 = vunpack.c.h.b16 %v1070
    %v1782 = vunpack.c.l.b16 %v1071
    %v1783 = vunpack.c.h.b16 %v1071
    %v1784 = vunpack.c.l.b16 %v1072
    %v1785 = vunpack.c.h.b16 %v1072
    %v1786 = vunpack.c.l.b16 %v1073
    %v1787 = vunpack.c.h.b16 %v1073
    %v1788 = vunpack.c.l.b16 %v1074
    %v1789 = vunpack.c.h.b16 %v1074
    %v1790 = vunpack.c.l.b16 %v1075
    %v1791 = vunpack.c.h.b16 %v1075
    %v1792 = vunpack.c.l.b16 %v1076
    %v1793 = vunpack.c.h.b16 %v1076
    %v1794 = vunpack.c.l.b16 %v1077
    %v1795 = vunpack.c.h.b16 %v1077
    %v1796 = vunpack.c.l.b16 %v1078
    %v1797 = vunpack.c.h.b16 %v1078
    %v1798 = vunpack.c.l.b16 %v1079
    %v1799 = vunpack.c.h.b16 %v1079
    %v1800 = vunpack.c.l.b16 %v1080
    %v1801 = vunpack.c.h.b16 %v1080
    %v1802 = vunpack.c.l.b16 %v1081
    %v1803 = vunpack.c.h.b16 %v1081
    %v1804 = vunpack.c.l.b16 %v1082
    %v1805 = vunpack.c.h.b16 %v1082
    %v1806 = vunpack.c.l.b16 %v1083
    %v1807 = vunpack.c.h.b16 %v1083
    %v1808 = vunpack.c.l.b16 %v1084
    %v1809 = vunpack.c.h.b16 %v1084
    %v1810 = vunpack.c.l.b16 %v1085
    %v1811 = vunpack.c.h.b16 %v1085
    %v1812 = vunpack.c.l.b16 %v1086
    %v1813 = vunpack.c.h.b16 %v1086
    %v1814 = vunpack.c.l.b16 %v1087
    %v1815 = vunpack.c.h.b16 %v1087
    %v1816 = vunpack.c.l.b16 %v1088
    %v1817 = vunpack.c.h.b16 %v1088
    %v1818 = vunpack.c.l.b16 %v1089
    %v1819 = vunpack.c.h.b16 %v1089
    %v1820 = vunpack.c.l.b16 %v1090
    %v1821 = vunpack.c.h.b16 %v1090
    %v1822 = vunpack.c.l.b16 %v1091
    %v1823 = vunpack.c.h.b16 %v1091
    %v1824 = vunpack.c.l.b16 %v1092
    %v1825 = vunpack.c.h.b16 %v1092
    %v1826 = vunpack.c.l.b16 %v1093
    %v1827 = vunpack.c.h.b16 %v1093
    %v1828 = vunpack.c.l.b16 %v1094
    %v1829 = vunpack.c.h.b16 %v1094
    %v1830 = vunpack.c.l.b16 %v1095
    %v1831 = vunpack.c.h.b16 %v1095
    %v1832 = vunpack.c.l.b16 %v1096
    %v1833 = vunpack.c.h.b16 %v1096
    %v1834 = vunpack.c.l.b16 %v1097
    %v1835 = vunpack.c.h.b16 %v1097
    %v1836 = vunpack.c.l.b16 %v1098
    %v1837 = vunpack.c.h.b16 %v1098
    %v1838 = vunpack.c.l.b16 %v1099
    %v1839 = vunpack.c.h.b16 %v1099
    %v1840 = vunpack.c.l.b16 %v1100
    %v1841 = vunpack.c.h.b16 %v1100
    %v1842 = vunpack.c.l.b16 %v1101
    %v1843 = vunpack.c.h.b16 %v1101
    %v1844 = vunpack.c.l.b16 %v1102
    %v1845 = vunpack.c.h.b16 %v1102
    %v1846 = vunpack.c.l.b16 %v1103
    %v1847 = vunpack.c.h.b16 %v1103
    %v1848 = vunpack.c.l.b16 %v1104
    %v1849 = vunpack.c.h.b16 %v1104
    %v1850 = vunpack.c.l.b16 %v1105
    %v1851 = vunpack.c.h.b16 %v1105
    %v1852 = vunpack.c.l.b16 %v1106
    %v1853 = vunpack.c.h.b16 %v1106
    %v1854 = vunpack.c.l.b16 %v1107
    %v1855 = vunpack.c.h.b16 %v1107
    %v1856 = vunpack.c.l.b16 %v1108
    %v1857 = vunpack.c.h.b16 %v1108
    %v1858 = vunpack.c.l.b16 %v1109
    %v1859 = vunpack.c.h.b16 %v1109
    %v1860 = vunpack.c.l.b16 %v1110
    %v1861 = vunpack.c.h.b16 %v1110
    %v1862 = vunpack.c.l.b16 %v1111
    %v1863 = vunpack.c.h.b16 %v1111
    %v1864 = vunpack.c.l.b16 %v1112
    %v1865 = vunpack.c.h.b16 %v1112
    %v1866 = vunpack.c.l.b16 %v1113
    %v1867 = vunpack.c.h.b16 %v1113
    %v1868 = vunpack.c.l.b16 %v1114
    %v1869 = vunpack.c.h.b16 %v1114
    %v1870 = vunpack.c.l.b16 %v1115
    %v1871 = vunpack.c.h.b16 %v1115
    %v1872 = vunpack.c.l.b16 %v1116
    %v1873 = vunpack.c.h.b16 %v1116
    %v1874 = vunpack.c.l.b16 %v1117
    %v1875 = vunpack.c.h.b16 %v1117
    %v1876 = vunpack.c.l.b16 %v1118
    %v1877 = vunpack.c.h.b16 %v1118
    %v1878 = vunpack.c.l.b16 %v1119
    %v1879 = vunpack.c.h.b16 %v1119
    %v1880 = vunpack.c.l.b16 %v1120
    %v1881 = vunpack.c.h.b16 %v1120
    %v1882 = vunpack.c.l.b16 %v1121
    %v1883 = vunpack.c.h.b16 %v1121
    %v1884 = vunpack.c.l.b16 %v1122
    %v1885 = vunpack.c.h.b16 %v1122
    %v1886 = vunpack.c.l.b16 %v1123
    %v1887 = vunpack.c.h.b16 %v1123
    %v1888 = vunpack.c.l.b16 %v1124
    %v1889 = vunpack.c.h.b16 %v1124
    %v1890 = vunpack.c.l.b16 %v1125
    %v1891 = vunpack.c.h.b16 %v1125
    %v1892 = vunpack.c.l.b16 %v1126
    %v1893 = vunpack.c.h.b16 %v1126
    %v1894 = vunpack.c.l.b16 %v1127
    %v1895 = vunpack.c.h.b16 %v1127
    %v1896 = vunpack.c.l.b16 %v1128
    %v1897 = vunpack.c.h.b16 %v1128
    %v1898 = vunpack.c.l.b16 %v1129
    %v1899 = vunpack.c.h.b16 %v1129
    %v1900 = vunpack.c.l.b16 %v1130
    %v1901 = vunpack.c.h.b16 %v1130
    %v1902 = vunpack.c.l.b16 %v1131
    %v1903 = vunpack.c.h.b16 %v1131
    %v1904 = vunpack.c.l.b16 %v1132
    %v1905 = vunpack.c.h.b16 %v1132
    %v1906 = vunpack.c.l.b16 %v1133
    %v1907 = vunpack.c.h.b16 %v1133
    %v1908 = vunpack.c.l.b16 %v1134
    %v1909 = vunpack.c.h.b16 %v1134
    %v1910 = vunpack.c.l.b16 %v1135
    %v1911 = vunpack.c.h.b16 %v1135
    %v1912 = vunpack.c.l.b16 %v1136
    %v1913 = vunpack.c.h.b16 %v1136
    %v1914 = vunpack.c.l.b16 %v1137
    %v1915 = vunpack.c.h.b16 %v1137
    %v1916 = vunpack.c.l.b16 %v1138
    %v1917 = vunpack.c.h.b16 %v1138
    %v1918 = vunpack.c.l.b16 %v1139
    %v1919 = vunpack.c.h.b16 %v1139
    %v1920 = vpack.c.b16 %v1410, %v1408
    %v1921 = vpack.c.b16 %v1411, %v1409
    %v1922 = vpack.c.b16 %v1414, %v1412
    %v1923 = vpack.c.b16 %v1415, %v1413
    %v1924 = vpack.c.b16 %v1418, %v1416
    %v1925 = vpack.c.b16 %v1419, %v1417
    %v1926 = vpack.c.b16 %v1422, %v1420
    %v1927 = vpack.c.b16 %v1423, %v1421
    %v1928 = vpack.c.b16 %v1426, %v1424
    %v1929 = vpack.c.b16 %v1427, %v1425
    %v1930 = vpack.c.b16 %v1430, %v1428
    %v1931 = vpack.c.b16 %v1431, %v1429
    %v1932 = vpack.c.b16 %v1434, %v1432
    %v1933 = vpack.c.b16 %v1435, %v1433
    %v1934 = vpack.c.b16 %v1438, %v1436
    %v1935 = vpack.c.b16 %v1439, %v1437
    %v1936 = vpack.c.b16 %v1442, %v1440
    %v1937 = vpack.c.b16 %v1443, %v1441
    %v1938 = vpack.c.b16 %v1446, %v1444
    %v1939 = vpack.c.b16 %v1447, %v1445
    %v1940 = vpack.c.b16 %v1450, %v1448
    %v1941 = vpack.c.b16 %v1451, %v1449
    %v1942 = vpack.c.b16 %v1454, %v1452
    %v1943 = vpack.c.b16 %v1455, %v1453
    %v1944 = vpack.c.b16 %v1458, %v1456
    %v1945 = vpack.c.b16 %v1459, %v1457
    %v1946 = vpack.c.b16 %v1462, %v1460
    %v1947 = vpack.c.b16 %v1463, %v1461
    %v1948 = vpack.c.b16 %v1466, %v1464
    %v1949 = vpack.c.b16 %v1467, %v1465
    %v1950 = vpack.c.b16 %v1470, %v1468
    %v1951 = vpack.c.b16 %v1471, %v1469
    %v1952 = vpack.c.b16 %v1474, %v1472
    %v1953 = vpack.c.b16 %v1475, %v1473
    %v1954 = vpack.c.b16 %v1478, %v1476
    %v1955 = vpack.c.b16 %v1479, %v1477
    %v1956 = vpack.c.b16 %v1482, %v1480
    %v1957 = vpack.c.b16 %v1483, %v1481
    %v1958 = vpack.c.b16 %v1486, %v1484
    %v1959 = vpack.c.b16 %v1487, %v1485
    %v1960 = vpack.c.b16 %v1490, %v1488
    %v1961 = vpack.c.b16 %v1491, %v1489
    %v1962 = vpack.c.b16 %v1494, %v1492
    %v1963 = vpack.c.b16 %v1495, %v1493
    %v1964 = vpack.c.b16 %v1498, %v1496
    %v1965 = vpack.c.b16 %v1499, %v1497
    %v1966 = vpack.c.b16 %v1502, %v1500
    %v1967 = vpack.c.b16 %v1503, %v1501
    %v1968 = vpack.c.b16 %v1506, %v1504
    %v1969 = vpack.c.b16 %v1507, %v1505
    %v1970 = vpack.c.b16 %v1510, %v1508
    %v1971 = vpack.c.b16 %v1511, %v1509
    %v1972 = vpack.c.b16 %v1514, %v1512
    %v1973 = vpack.c.b16 %v1515, %v1513
    %v1974 = vpack.c.b16 %v1518, %v1516
    %v1975 = vpack.c.b16 %v1519, %v1517
    %v1976 = vpack.c.b16 %v1522, %v1520
    %v1977 = vpack.c.b16 %v1523, %v1521
    %v1978 = vpack.c.b16 %v1526, %v1524
    %v1979 = vpack.c.b16 %v1527, %v1525
    %v1980 = vpack.c.b16 %v1530, %v1528
    %v1981 = vpack.c.b16 %v1531, %v1529
    %v1982 = vpack.c.b16 %v1534, %v1532
    %v1983 = vpack.c.b16 %v1535, %v1533
    %v1984 = vpack.c.b16 %v1538, %v1536
    %v1985 = vpack.c.b16 %v1539, %v1537
    %v1986 = vpack.c.b16 %v1542, %v1540
    %v1987 = vpack.c.b16 %v1543, %v1541
    %v1988 = vpack.c.b16 %v1546, %v1544
    %v1989 = vpack.c.b16 %v1547, %v1545
    %v1990 = vpack.c.b16 %v1550, %v1548
    %v1991 = vpack.c.b16 %v1551, %v1549
    %v1992 = vpack.c.b16 %v1554, %v1552
    %v1993 = vpack.c.b16 %v1555, %v1553
    %v1994 = vpack.c.b16 %v1558, %v1556
    %v1995 = vpack.c.b16 %v1559, %v1557
    %v1996 = vpack.c.b16 %v1562, %v1560
    %v1997 = vpack.c.b16 %v1563, %v1561
    %v1998 = vpack.c.b16 %v1566, %v1564
    %v1999 = vpack.c.b16 %v1567, %v1565
    %v2000 = vpack.c.b16 %v1570, %v1568
    %v2001 = vpack.c.b16 %v1571, %v1569
    %v2002 = vpack.c.b16 %v1574, %v1572
    %v2003 = vpack.c.b16 %v1575, %v1573
    %v2004 = vpack.c.b16 %v1578, %v1576
    %v2005 = vpack.c.b16 %v1579, %v1577
    %v2006 = vpack.c.b16 %v1582, %v1580
    %v2007 = vpack.c.b16 %v1583, %v1581
    %v2008 = vpack.c.b16 %v1586, %v1584
    %v2009 = vpack.c.b16 %v1587, %v1585
    %v2010 = vpack.c.b16 %v1590, %v1588
    %v2011 = vpack.c.b16 %v1591, %v1589
    %v2012 = vpack.c.b16 %v1594, %v1592
    %v2013 = vpack.c.b16 %v1595, %v1593
    %v2014 = vpack.c.b16 %v1598, %v1596
    %v2015 = vpack.c.b16 %v1599, %v1597
    %v2016 = vpack.c.b16 %v1602, %v1600
    %v2017 = vpack.c.b16 %v1603, %v1601
    %v2018 = vpack.c.b16 %v1606, %v1604
    %v2019 = vpack.c.b16 %v1607, %v1605
    %v2020 = vpack.c.b16 %v1610, %v1608
    %v2021 = vpack.c.b16 %v1611, %v1609
    %v2022 = vpack.c.b16 %v1614, %v1612
    %v2023 = vpack.c.b16 %v1615, %v1613
    %v2024 = vpack.c.b16 %v1618, %v1616
    %v2025 = vpack.c.b16 %v1619, %v1617
    %v2026 = vpack.c.b16 %v1622, %v1620
    %v2027 = vpack.c.b16 %v1623, %v1621
    %v2028 = vpack.c.b16 %v1626, %v1624
    %v2029 = vpack.c.b16 %v1627, %v1625
    %v2030 = vpack.c.b16 %v1630, %v1628
    %v2031 = vpack.c.b16 %v1631, %v1629
    %v2032 = vpack.c.b16 %v1634, %v1632
    %v2033 = vpack.c.b16 %v1635, %v1633
    %v2034 = vpack.c.b16 %v1638, %v1636
    %v2035 = vpack.c.b16 %v1639, %v1637
    %v2036 = vpack.c.b16 %v1642, %v1640
    %v2037 = vpack.c.b16 %v1643, %v1641
    %v2038 = vpack.c.b16 %v1646, %v1644
    %v2039 = vpack.c.b16 %v1647, %v1645
    %v2040 = vpack.c.b16 %v1650, %v1648
    %v2041 = vpack.c.b16 %v1651, %v1649
    %v2042 = vpack.c.b16 %v1654, %v1652
    %v2043 = vpack.c.b16 %v1655, %v1653
    %v2044 = vpack.c.b16 %v1658, %v1656
    %v2045 = vpack.c.b16 %v1659, %v1657
    %v2046 = vpack.c.b16 %v1662, %v1660
    %v2047 = vpack.c.b16 %v1663, %v1661
    %v2048 = vpack.c.b16 %v1666, %v1664
    %v2049 = vpack.c.b16 %v1667, %v1665
    %v2050 = vpack.c.b16 %v1670, %v1668
    %v2051 = vpack.c.b16 %v1671, %v1669
    %v2052 = vpack.c.b16 %v1674, %v1672
    %v2053 = vpack.c.b16 %v1675, %v1673
    %v2054 = vpack.c.b16 %v1678, %v1676
    %v2055 = vpack.c.b16 %v1679, %v1677
    %v2056 = vpack.c.b16 %v1682, %v1680
    %v2057 = vpack.c.b16 %v1683, %v1681
    %v2058 = vpack.c.b16 %v1686, %v1684
    %v2059 = vpack.c.b16 %v1687, %v1685
    %v2060 = vpack.c.b16 %v1690, %v1688
    %v2061 = vpack.c.b16 %v1691, %v1689
    %v2062 = vpack.c.b16 %v1694, %v1692
    %v2063 = vpack.c.b16 %v1695, %v1693
    %v2064 = vpack.c.b16 %v1698, %v1696
    %v2065 = vpack.c.b16 %v1699, %v1697
    %v2066 = vpack.c.b16 %v1702, %v1700
    %v2067 = vpack.c.b16 %v1703, %v1701
    %v2068 = vpack.c.b16 %v1706, %v1704
    %v2069 = vpack.c.b16 %v1707, %v1705
    %v2070 = vpack.c.b16 %v1710, %v1708
    %v2071 = vpack.c.b16 %v1711, %v1709
    %v2072 = vpack.c.b16 %v1714, %v1712
    %v2073 = vpack.c.b16 %v1715, %v1713
    %v2074 = vpack.c.b16 %v1718, %v1716
    %v2075 = vpack.c.b16 %v1719, %v1717
    %v2076 = vpack.c.b16 %v1722, %v1720
    %v2077 = vpack.c.b16 %v1723, %v1721
    %v2078 = vpack.c.b16 %v1726, %v1724
    %v2079 = vpack.c.b16 %v1727, %v1725
    %v2080 = vpack.c.b16 %v1730, %v1728
    %v2081 = vpack.c.b16 %v1731, %v1729
    %v2082 = vpack.c.b16 %v1734, %v1732
    %v2083 = vpack.c.b16 %v1735, %v1733
    %v2084 = vpack.c.b16 %v1738, %v1736
    %v2085 = vpack.c.b16 %v1739, %v1737
    %v2086 = vpack.c.b16 %v1742, %v1740
    %v2087 = vpack.c.b16 %v1743, %v1741
    %v2088 = vpack.c.b16 %v1746, %v1744
    %v2089 = vpack.c.b16 %v1747, %v1745
    %v2090 = vpack.c.b16 %v1750, %v1748
    %v2091 = vpack.c.b16 %v1751, %v1749
    %v2092 = vpack.c.b16 %v1754, %v1752
    %v2093 = vpack.c.b16 %v1755, %v1753
    %v2094 = vpack.c.b16 %v1758, %v1756
    %v2095 = vpack.c.b16 %v1759, %v1757
    %v2096 = vpack.c.b16 %v1762, %v1760
    %v2097 = vpack.c.b16 %v1763, %v1761
    %v2098 = vpack.c.b16 %v1766, %v1764
    %v2099 = vpack.c.b16 %v1767, %v1765
    %v2100 = vpack.c.b16 %v1770, %v1768
    %v2101 = vpack.c.b16 %v1771, %v1769
    %v2102 = vpack.c.b16 %v1774, %v1772
    %v2103 = vpack.c.b16 %v1775, %v1773
    %v2104 = vpack.c.b16 %v1778, %v1776
    %v2105 = vpack.c.b16 %v1779, %v1777
    %v2106 = vpack.c.b16 %v1782, %v1780
    %v2107 = vpack.c.b16 %v1783, %v1781
    %v2108 = vpack.c.b16 %v1786, %v1784
    %v2109 = vpack.c.b16 %v1787, %v1785
    %v2110 = vpack.c.b16 %v1790, %v1788
    %v2111 = vpack.c.b16 %v1791, %v1789
    %v2112 = vpack.c.b16 %v1794, %v1792
    %v2113 = vpack.c.b16 %v1795, %v1793
    %v2114 = vpack.c.b16 %v1798, %v1796
    %v2115 = vpack.c.b16 %v1799, %v1797
    %v2116 = vpack.c.b16 %v1802, %v1800
    %v2117 = vpack.c.b16 %v1803, %v1801
    %v2118 = vpack.c.b16 %v1806, %v1804
    %v2119 = vpack.c.b16 %v1807, %v1805
    %v2120 = vpack.c.b16 %v1810, %v1808
    %v2121 = vpack.c.b16 %v1811, %v1809
    %v2122 = vpack.c.b16 %v1814, %v1812
    %v2123 = vpack.c.b16 %v1815, %v1813
    %v2124 = vpack.c.b16 %v1818, %v1816
    %v2125 = vpack.c.b16 %v1819, %v1817
    %v2126 = vpack.c.b16 %v1822, %v1820
    %v2127 = vpack.c.b16 %v1823, %v1821
    %v2128 = vpack.c.b16 %v1826, %v1824
    %v2129 = vpack.c.b16 %v1827, %v1825
    %v2130 = vpack.c.b16 %v1830, %v1828
    %v2131 = vpack.c.b16 %v1831, %v1829
    %v2132 = vpack.c.b16 %v1834, %v1832
    %v2133 = vpack.c.b16 %v1835, %v1833
    %v2134 = vpack.c.b16 %v1838, %v1836
    %v2135 = vpack.c.b16 %v1839, %v1837
    %v2136 = vpack.c.b16 %v1842, %v1840
    %v2137 = vpack.c.b16 %v1843, %v1841
    %v2138 = vpack.c.b16 %v1846, %v1844
    %v2139 = vpack.c.b16 %v1847, %v1845
    %v2140 = vpack.c.b16 %v1850, %v1848
    %v2141 = vpack.c.b16 %v1851, %v1849
    %v2142 = vpack.c.b16 %v1854, %v1852
    %v2143 = vpack.c.b16 %v1855, %v1853
    %v2144 = vpack.c.b16 %v1858, %v1856
    %v2145 = vpack.c.b16 %v1859, %v1857
    %v2146 = vpack.c.b16 %v1862, %v1860
    %v2147 = vpack.c.b16 %v1863, %v1861
    %v2148 = vpack.c.b16 %v1866, %v1864
    %v2149 = vpack.c.b16 %v1867, %v1865
    %v2150 = vpack.c.b16 %v1870, %v1868
    %v2151 = vpack.c.b16 %v1871, %v1869
    %v2152 = vpack.c.b16 %v1874, %v1872
    %v2153 = vpack.c.b16 %v1875, %v1873
    %v2154 = vpack.c.b16 %v1878, %v1876
    %v2155 = vpack.c.b16 %v1879, %v1877
    %v2156 = vpack.c.b16 %v1882, %v1880
    %v2157 = vpack.c.b16 %v1883, %v1881
    %v2158 = vpack.c.b16 %v1886, %v1884
    %v2159 = vpack.c.b16 %v1887, %v1885
    %v2160 = vpack.c.b16 %v1890, %v1888
    %v2161 = vpack.c.b16 %v1891, %v1889
    %v2162 = vpack.c.b16 %v1894, %v1892
    %v2163 = vpack.c.b16 %v1895, %v1893
    %v2164 = vpack.c.b16 %v1898, %v1896
    %v2165 = vpack.c.b16 %v1899, %v1897
    %v2166 = vpack.c.b16 %v1902, %v1900
    %v2167 = vpack.c.b16 %v1903, %v1901
    %v2168 = vpack.c.b16 %v1906, %v1904
    %v2169 = vpack.c.b16 %v1907, %v1905
    %v2170 = vpack.c.b16 %v1910, %v1908
    %v2171 = vpack.c.b16 %v1911, %v1909
    %v2172 = vpack.c.b16 %v1914, %v1912
    %v2173 = vpack.c.b16 %v1915, %v1913
    %v2174 = vpack.c.b16 %v1918, %v1916
    %v2175 = vpack.c.b16 %v1919, %v1917
    %2432 = vmatprep.subr.bf16.mxu0 %v1921
    %2433 = vmatpush1.bf16.msra.mxu0 %v1920
    %2434 = vmatprep.subr.bf16.mxu0 %v1923
    %2435 = vmatpush1.bf16.msra.mxu0 %v1922
    %2436 = vmatprep.subr.bf16.mxu0 %v1925
    %2437 = vmatpush1.bf16.msra.mxu0 %v1924
    %2438 = vmatprep.subr.bf16.mxu0 %v1927
    %2439 = vmatpush1.bf16.msra.mxu0 %v1926
    %2440 = vmatprep.subr.bf16.mxu0 %v1929
    %2441 = vmatpush1.bf16.msra.mxu0 %v1928
    %2442 = vmatprep.subr.bf16.mxu0 %v1931
    %2443 = vmatpush1.bf16.msra.mxu0 %v1930
    %2444 = vmatprep.subr.bf16.mxu0 %v1933
    %2445 = vmatpush1.bf16.msra.mxu0 %v1932
    %2446 = vmatprep.subr.bf16.mxu0 %v1935
    %2447 = vmatpush1.bf16.msra.mxu0 %v1934
    %2448 = vmatprep.subr.bf16.mxu0 %v1937
    %2449 = vmatpush1.bf16.msra.mxu0 %v1936
    %2450 = vmatprep.subr.bf16.mxu0 %v1939
    %2451 = vmatpush1.bf16.msra.mxu0 %v1938
    %2452 = vmatprep.subr.bf16.mxu0 %v1941
    %2453 = vmatpush1.bf16.msra.mxu0 %v1940
    %2454 = vmatprep.subr.bf16.mxu0 %v1943
    %2455 = vmatpush1.bf16.msra.mxu0 %v1942
    %2456 = vmatprep.subr.bf16.mxu0 %v1945
    %2457 = vmatpush1.bf16.msra.mxu0 %v1944
    %2458 = vmatprep.subr.bf16.mxu0 %v1947
    %2459 = vmatpush1.bf16.msra.mxu0 %v1946
    %2460 = vmatprep.subr.bf16.mxu0 %v1949
    %2461 = vmatpush1.bf16.msra.mxu0 %v1948
    %2462 = vmatprep.subr.bf16.mxu0 %v1951
    %2463 = vmatpush1.bf16.msra.mxu0 %v1950
    %2464 = vmatprep.mubr.bf16.mxu0 %v869
    %2465 = vmatmul.mubr.bf16.gmra.mrb[0].mxu0 %v868
    %v2466 = vpop.f32.mrb[0].mxu0
    %v2467 = vadd.f32 %v1145, %v2466
    %v2468 = vpop.f32.mrb[0].mxu0
    %v2469 = vadd.f32 %v1149, %v2468
    %v2470 = vpop.f32.mrb[0].mxu0
    %v2471 = vpop.f32.mrb[0].mxu0
    %2472 = vdwg.mxu0
    %2473 = vmatprep.subr.bf16.mxu0 %v1953
    %2474 = vmatpush1.bf16.msra.mxu0 %v1952
    %2475 = vmatprep.subr.bf16.mxu0 %v1955
    %2476 = vmatpush1.bf16.msra.mxu0 %v1954
    %2477 = vmatprep.subr.bf16.mxu0 %v1957
    %2478 = vmatpush1.bf16.msra.mxu0 %v1956
    %2479 = vmatprep.subr.bf16.mxu0 %v1959
    %2480 = vmatpush1.bf16.msra.mxu0 %v1958
    %2481 = vmatprep.subr.bf16.mxu0 %v1961
    %2482 = vmatpush1.bf16.msra.mxu0 %v1960
    %2483 = vmatprep.subr.bf16.mxu0 %v1963
    %2484 = vmatpush1.bf16.msra.mxu0 %v1962
    %2485 = vmatprep.subr.bf16.mxu0 %v1965
    %2486 = vmatpush1.bf16.msra.mxu0 %v1964
    %2487 = vmatprep.subr.bf16.mxu0 %v1967
    %2488 = vmatpush1.bf16.msra.mxu0 %v1966
    %2489 = vmatprep.subr.bf16.mxu0 %v1969
    %2490 = vmatpush1.bf16.msra.mxu0 %v1968
    %2491 = vmatprep.subr.bf16.mxu0 %v1971
    %2492 = vmatpush1.bf16.msra.mxu0 %v1970
    %2493 = vmatprep.subr.bf16.mxu0 %v1973
    %2494 = vmatpush1.bf16.msra.mxu0 %v1972
    %2495 = vmatprep.subr.bf16.mxu0 %v1975
    %2496 = vmatpush1.bf16.msra.mxu0 %v1974
    %2497 = vmatprep.subr.bf16.mxu0 %v1977
    %2498 = vmatpush1.bf16.msra.mxu0 %v1976
    %2499 = vmatprep.subr.bf16.mxu0 %v1979
    %2500 = vmatpush1.bf16.msra.mxu0 %v1978
    %2501 = vmatprep.subr.bf16.mxu0 %v1981
    %2502 = vmatpush1.bf16.msra.mxu0 %v1980
    %2503 = vmatprep.subr.bf16.mxu0 %v1983
    %2504 = vmatpush1.bf16.msra.mxu0 %v1982
    %2505 = vmatprep.mubr.bf16.mxu0 %v871
    %2506 = vmatmul.mubr.bf16.gmra.mrb[0].mxu0 %v870
    %v2507 = vpop.f32.mrb[0].mxu0
    %v2508 = vadd.f32 %v2467, %v2507
    %v2509 = vpop.f32.mrb[0].mxu0
    %v2510 = vadd.f32 %v2469, %v2509
    %v2511 = vpop.f32.mrb[0].mxu0
    %v2512 = vpop.f32.mrb[0].mxu0
    %2513 = vdwg.mxu0
    %2514 = vmatprep.subr.bf16.mxu0 %v1985
    %2515 = vmatpush1.bf16.msra.mxu0 %v1984
    %2516 = vmatprep.subr.bf16.mxu0 %v1987
    %2517 = vmatpush1.bf16.msra.mxu0 %v1986
    %2518 = vmatprep.subr.bf16.mxu0 %v1989
    %2519 = vmatpush1.bf16.msra.mxu0 %v1988
    %2520 = vmatprep.subr.bf16.mxu0 %v1991
    %2521 = vmatpush1.bf16.msra.mxu0 %v1990
    %2522 = vmatprep.subr.bf16.mxu0 %v1993
    %2523 = vmatpush1.bf16.msra.mxu0 %v1992
    %2524 = vmatprep.subr.bf16.mxu0 %v1995
    %2525 = vmatpush1.bf16.msra.mxu0 %v1994
    %2526 = vmatprep.subr.bf16.mxu0 %v1997
    %2527 = vmatpush1.bf16.msra.mxu0 %v1996
    %2528 = vmatprep.subr.bf16.mxu0 %v1999
    %2529 = vmatpush1.bf16.msra.mxu0 %v1998
    %2530 = vmatprep.subr.bf16.mxu0 %v2001
    %2531 = vmatpush1.bf16.msra.mxu0 %v2000
    %2532 = vmatprep.subr.bf16.mxu0 %v2003
    %2533 = vmatpush1.bf16.msra.mxu0 %v2002
    %2534 = vmatprep.subr.bf16.mxu0 %v2005
    %2535 = vmatpush1.bf16.msra.mxu0 %v2004
    %2536 = vmatprep.subr.bf16.mxu0 %v2007
    %2537 = vmatpush1.bf16.msra.mxu0 %v2006
    %2538 = vmatprep.subr.bf16.mxu0 %v2009
    %2539 = vmatpush1.bf16.msra.mxu0 %v2008
    %2540 = vmatprep.subr.bf16.mxu0 %v2011
    %2541 = vmatpush1.bf16.msra.mxu0 %v2010
    %2542 = vmatprep.subr.bf16.mxu0 %v2013
    %2543 = vmatpush1.bf16.msra.mxu0 %v2012
    %2544 = vmatprep.subr.bf16.mxu0 %v2015
    %2545 = vmatpush1.bf16.msra.mxu0 %v2014
    %2546 = vmatprep.mubr.bf16.mxu0 %v873
    %2547 = vmatmul.mubr.bf16.gmra.mrb[0].mxu0 %v872
    %v2548 = vpop.f32.mrb[0].mxu0
    %v2549 = vadd.f32 %v2508, %v2548
    %v2550 = vpop.f32.mrb[0].mxu0
    %v2551 = vadd.f32 %v2510, %v2550
    %v2552 = vpop.f32.mrb[0].mxu0
    %v2553 = vpop.f32.mrb[0].mxu0
    %2554 = vdwg.mxu0
    %2555 = vmatprep.subr.bf16.mxu0 %v2017
    %2556 = vmatpush1.bf16.msra.mxu0 %v2016
    %2557 = vmatprep.subr.bf16.mxu0 %v2019
    %2558 = vmatpush1.bf16.msra.mxu0 %v2018
    %2559 = vmatprep.subr.bf16.mxu0 %v2021
    %2560 = vmatpush1.bf16.msra.mxu0 %v2020
    %2561 = vmatprep.subr.bf16.mxu0 %v2023
    %2562 = vmatpush1.bf16.msra.mxu0 %v2022
    %2563 = vmatprep.subr.bf16.mxu0 %v2025
    %2564 = vmatpush1.bf16.msra.mxu0 %v2024
    %2565 = vmatprep.subr.bf16.mxu0 %v2027
    %2566 = vmatpush1.bf16.msra.mxu0 %v2026
    %2567 = vmatprep.subr.bf16.mxu0 %v2029
    %2568 = vmatpush1.bf16.msra.mxu0 %v2028
    %2569 = vmatprep.subr.bf16.mxu0 %v2031
    %2570 = vmatpush1.bf16.msra.mxu0 %v2030
    %2571 = vmatprep.subr.bf16.mxu0 %v2033
    %2572 = vmatpush1.bf16.msra.mxu0 %v2032
    %2573 = vmatprep.subr.bf16.mxu0 %v2035
    %2574 = vmatpush1.bf16.msra.mxu0 %v2034
    %2575 = vmatprep.subr.bf16.mxu0 %v2037
    %2576 = vmatpush1.bf16.msra.mxu0 %v2036
    %2577 = vmatprep.subr.bf16.mxu0 %v2039
    %2578 = vmatpush1.bf16.msra.mxu0 %v2038
    %2579 = vmatprep.subr.bf16.mxu0 %v2041
    %2580 = vmatpush1.bf16.msra.mxu0 %v2040
    %2581 = vmatprep.subr.bf16.mxu0 %v2043
    %2582 = vmatpush1.bf16.msra.mxu0 %v2042
    %2583 = vmatprep.subr.bf16.mxu0 %v2045
    %2584 = vmatpush1.bf16.msra.mxu0 %v2044
    %2585 = vmatprep.subr.bf16.mxu0 %v2047
    %2586 = vmatpush1.bf16.msra.mxu0 %v2046
    %2587 = vmatprep.mubr.bf16.mxu0 %v875
    %2588 = vmatmul.mubr.bf16.gmra.mrb[0].mxu0 %v874
    %v2589 = vpop.f32.mrb[0].mxu0
    %v2590 = vadd.f32 %v2549, %v2589
    %v2591 = vpop.f32.mrb[0].mxu0
    %v2592 = vadd.f32 %v2551, %v2591
    %v2593 = vpop.f32.mrb[0].mxu0
    %v2594 = vpop.f32.mrb[0].mxu0
    %2595 = vdwg.mxu0
    %2596 = vmatprep.subr.bf16.mxu0 %v2049
    %2597 = vmatpush1.bf16.msra.mxu0 %v2048
    %2598 = vmatprep.subr.bf16.mxu0 %v2051
    %2599 = vmatpush1.bf16.msra.mxu0 %v2050
    %2600 = vmatprep.subr.bf16.mxu0 %v2053
    %2601 = vmatpush1.bf16.msra.mxu0 %v2052
    %2602 = vmatprep.subr.bf16.mxu0 %v2055
    %2603 = vmatpush1.bf16.msra.mxu0 %v2054
    %2604 = vmatprep.subr.bf16.mxu0 %v2057
    %2605 = vmatpush1.bf16.msra.mxu0 %v2056
    %2606 = vmatprep.subr.bf16.mxu0 %v2059
    %2607 = vmatpush1.bf16.msra.mxu0 %v2058
    %2608 = vmatprep.subr.bf16.mxu0 %v2061
    %2609 = vmatpush1.bf16.msra.mxu0 %v2060
    %2610 = vmatprep.subr.bf16.mxu0 %v2063
    %2611 = vmatpush1.bf16.msra.mxu0 %v2062
    %2612 = vmatprep.subr.bf16.mxu0 %v2065
    %2613 = vmatpush1.bf16.msra.mxu0 %v2064
    %2614 = vmatprep.subr.bf16.mxu0 %v2067
    %2615 = vmatpush1.bf16.msra.mxu0 %v2066
    %2616 = vmatprep.subr.bf16.mxu0 %v2069
    %2617 = vmatpush1.bf16.msra.mxu0 %v2068
    %2618 = vmatprep.subr.bf16.mxu0 %v2071
    %2619 = vmatpush1.bf16.msra.mxu0 %v2070
    %2620 = vmatprep.subr.bf16.mxu0 %v2073
    %2621 = vmatpush1.bf16.msra.mxu0 %v2072
    %2622 = vmatprep.subr.bf16.mxu0 %v2075
    %2623 = vmatpush1.bf16.msra.mxu0 %v2074
    %2624 = vmatprep.subr.bf16.mxu0 %v2077
    %2625 = vmatpush1.bf16.msra.mxu0 %v2076
    %2626 = vmatprep.subr.bf16.mxu0 %v2079
    %2627 = vmatpush1.bf16.msra.mxu0 %v2078
    %2628 = vmatprep.mubr.bf16.mxu0 %v877
    %2629 = vmatmul.mubr.bf16.gmra.mrb[0].mxu0 %v876
    %v2630 = vpop.f32.mrb[0].mxu0
    %v2631 = vadd.f32 %v2590, %v2630
    %v2632 = vpop.f32.mrb[0].mxu0
    %v2633 = vadd.f32 %v2592, %v2632
    %v2634 = vpop.f32.mrb[0].mxu0
    %v2635 = vpop.f32.mrb[0].mxu0
    %2636 = vdwg.mxu0
    %2637 = vmatprep.subr.bf16.mxu0 %v2081
    %2638 = vmatpush1.bf16.msra.mxu0 %v2080
    %2639 = vmatprep.subr.bf16.mxu0 %v2083
    %2640 = vmatpush1.bf16.msra.mxu0 %v2082
    %2641 = vmatprep.subr.bf16.mxu0 %v2085
    %2642 = vmatpush1.bf16.msra.mxu0 %v2084
    %2643 = vmatprep.subr.bf16.mxu0 %v2087
    %2644 = vmatpush1.bf16.msra.mxu0 %v2086
    %2645 = vmatprep.subr.bf16.mxu0 %v2089
    %2646 = vmatpush1.bf16.msra.mxu0 %v2088
    %2647 = vmatprep.subr.bf16.mxu0 %v2091
    %2648 = vmatpush1.bf16.msra.mxu0 %v2090
    %2649 = vmatprep.subr.bf16.mxu0 %v2093
    %2650 = vmatpush1.bf16.msra.mxu0 %v2092
    %2651 = vmatprep.subr.bf16.mxu0 %v2095
    %2652 = vmatpush1.bf16.msra.mxu0 %v2094
    %2653 = vmatprep.subr.bf16.mxu0 %v2097
    %2654 = vmatpush1.bf16.msra.mxu0 %v2096
    %2655 = vmatprep.subr.bf16.mxu0 %v2099
    %2656 = vmatpush1.bf16.msra.mxu0 %v2098
    %2657 = vmatprep.subr.bf16.mxu0 %v2101
    %2658 = vmatpush1.bf16.msra.mxu0 %v2100
    %2659 = vmatprep.subr.bf16.mxu0 %v2103
    %2660 = vmatpush1.bf16.msra.mxu0 %v2102
    %2661 = vmatprep.subr.bf16.mxu0 %v2105
    %2662 = vmatpush1.bf16.msra.mxu0 %v2104
    %2663 = vmatprep.subr.bf16.mxu0 %v2107
    %2664 = vmatpush1.bf16.msra.mxu0 %v2106
    %2665 = vmatprep.subr.bf16.mxu0 %v2109
    %2666 = vmatpush1.bf16.msra.mxu0 %v2108
    %2667 = vmatprep.subr.bf16.mxu0 %v2111
    %2668 = vmatpush1.bf16.msra.mxu0 %v2110
    %2669 = vmatprep.mubr.bf16.mxu0 %v879
    %2670 = vmatmul.mubr.bf16.gmra.mrb[0].mxu0 %v878
    %v2671 = vpop.f32.mrb[0].mxu0
    %v2672 = vadd.f32 %v2631, %v2671
    %v2673 = vpop.f32.mrb[0].mxu0
    %v2674 = vadd.f32 %v2633, %v2673
    %v2675 = vpop.f32.mrb[0].mxu0
    %v2676 = vpop.f32.mrb[0].mxu0
    %2677 = vdwg.mxu0
    %2678 = vmatprep.subr.bf16.mxu0 %v2113
    %2679 = vmatpush1.bf16.msra.mxu0 %v2112
    %2680 = vmatprep.subr.bf16.mxu0 %v2115
    %2681 = vmatpush1.bf16.msra.mxu0 %v2114
    %2682 = vmatprep.subr.bf16.mxu0 %v2117
    %2683 = vmatpush1.bf16.msra.mxu0 %v2116
    %2684 = vmatprep.subr.bf16.mxu0 %v2119
    %2685 = vmatpush1.bf16.msra.mxu0 %v2118
    %2686 = vmatprep.subr.bf16.mxu0 %v2121
    %2687 = vmatpush1.bf16.msra.mxu0 %v2120
    %2688 = vmatprep.subr.bf16.mxu0 %v2123
    %2689 = vmatpush1.bf16.msra.mxu0 %v2122
    %2690 = vmatprep.subr.bf16.mxu0 %v2125
    %2691 = vmatpush1.bf16.msra.mxu0 %v2124
    %2692 = vmatprep.subr.bf16.mxu0 %v2127
    %2693 = vmatpush1.bf16.msra.mxu0 %v2126
    %2694 = vmatprep.subr.bf16.mxu0 %v2129
    %2695 = vmatpush1.bf16.msra.mxu0 %v2128
    %2696 = vmatprep.subr.bf16.mxu0 %v2131
    %2697 = vmatpush1.bf16.msra.mxu0 %v2130
    %2698 = vmatprep.subr.bf16.mxu0 %v2133
    %2699 = vmatpush1.bf16.msra.mxu0 %v2132
    %2700 = vmatprep.subr.bf16.mxu0 %v2135
    %2701 = vmatpush1.bf16.msra.mxu0 %v2134
    %2702 = vmatprep.subr.bf16.mxu0 %v2137
    %2703 = vmatpush1.bf16.msra.mxu0 %v2136
    %2704 = vmatprep.subr.bf16.mxu0 %v2139
    %2705 = vmatpush1.bf16.msra.mxu0 %v2138
    %2706 = vmatprep.subr.bf16.mxu0 %v2141
    %2707 = vmatpush1.bf16.msra.mxu0 %v2140
    %2708 = vmatprep.subr.bf16.mxu0 %v2143
    %2709 = vmatpush1.bf16.msra.mxu0 %v2142
    %2710 = vmatprep.mubr.bf16.mxu0 %v881
    %2711 = vmatmul.mubr.bf16.gmra.mrb[0].mxu0 %v880
    %v2712 = vpop.f32.mrb[0].mxu0
    %v2713 = vadd.f32 %v2672, %v2712
    %v2714 = vpop.f32.mrb[0].mxu0
    %v2715 = vadd.f32 %v2674, %v2714
    %v2716 = vpop.f32.mrb[0].mxu0
    %v2717 = vpop.f32.mrb[0].mxu0
    %2718 = vdwg.mxu0
    %2719 = vmatprep.subr.bf16.mxu0 %v2145
    %2720 = vmatpush1.bf16.msra.mxu0 %v2144
    %2721 = vmatprep.subr.bf16.mxu0 %v2147
    %2722 = vmatpush1.bf16.msra.mxu0 %v2146
    %2723 = vmatprep.subr.bf16.mxu0 %v2149
    %2724 = vmatpush1.bf16.msra.mxu0 %v2148
    %2725 = vmatprep.subr.bf16.mxu0 %v2151
    %2726 = vmatpush1.bf16.msra.mxu0 %v2150
    %2727 = vmatprep.subr.bf16.mxu0 %v2153
    %2728 = vmatpush1.bf16.msra.mxu0 %v2152
    %2729 = vmatprep.subr.bf16.mxu0 %v2155
    %2730 = vmatpush1.bf16.msra.mxu0 %v2154
    %2731 = vmatprep.subr.bf16.mxu0 %v2157
    %2732 = vmatpush1.bf16.msra.mxu0 %v2156
    %2733 = vmatprep.subr.bf16.mxu0 %v2159
    %2734 = vmatpush1.bf16.msra.mxu0 %v2158
    %2735 = vmatprep.subr.bf16.mxu0 %v2161
    %2736 = vmatpush1.bf16.msra.mxu0 %v2160
    %2737 = vmatprep.subr.bf16.mxu0 %v2163
    %2738 = vmatpush1.bf16.msra.mxu0 %v2162
    %2739 = vmatprep.subr.bf16.mxu0 %v2165
    %2740 = vmatpush1.bf16.msra.mxu0 %v2164
    %2741 = vmatprep.subr.bf16.mxu0 %v2167
    %2742 = vmatpush1.bf16.msra.mxu0 %v2166
    %2743 = vmatprep.subr.bf16.mxu0 %v2169
    %2744 = vmatpush1.bf16.msra.mxu0 %v2168
    %2745 = vmatprep.subr.bf16.mxu0 %v2171
    %2746 = vmatpush1.bf16.msra.mxu0 %v2170
    %2747 = vmatprep.subr.bf16.mxu0 %v2173
    %2748 = vmatpush1.bf16.msra.mxu0 %v2172
    %2749 = vmatprep.subr.bf16.mxu0 %v2175
    %2750 = vmatpush1.bf16.msra.mxu0 %v2174
    %2751 = vmatprep.mubr.bf16.mxu0 %v883
    %2752 = vmatmul.mubr.bf16.gmra.mrb[0].mxu0 %v882
    %v2753 = vpop.f32.mrb[0].mxu0
    %v2754 = vadd.f32 %v2713, %v2753
    %v2755 = vpop.f32.mrb[0].mxu0
    %v2756 = vadd.f32 %v2715, %v2755
    %v2757 = vpop.f32.mrb[0].mxu0
    %v2758 = vpop.f32.mrb[0].mxu0
    %2759 = vdwg.mxu0
    %v2760 = vmax.f32 %v2754, 0.0
    %v2761 = vmax.f32 %v2756, 0.0
    %v2762 = vld [vmem:[%s7] sm:$0x1]
    %v2763 = vlaneseq
    %v2764 = vshrl.u32 %v2763, 7
    %v2765 = vsub.s32 0, %v2764
    %v2766 = vrot.slane %v2762, %v2765
    %v2767 = vmul.f32 %v2760, %v2766
    %2768 = vadd.xlane.f32.xlu0 %v2767
    %v2769 = vpop.xlane.xlu0 %2768
    %v2770 = vld [vmem:[%s7 + $0x1] sm:$0x1]
    %v2771 = vlaneseq
    %v2772 = vshrl.u32 %v2771, 7
    %v2773 = vsub.s32 0, %v2772
    %v2774 = vrot.slane %v2770, %v2773
    %v2775 = vmul.f32 %v2761, %v2774
    %2776 = vadd.xlane.f32.xlu0 %v2775
    %v2777 = vpop.xlane.xlu0 %2776
    %vm2778 = vcmask 7168
    %v2779 = vsel %vm2778, %v2769, %v2777
    %v2780 = vld [vmem:[%s8] sm:$0x1]
    %v2782 = vlaneseq
    %v2783 = vshrl.u32 %v2782, 7
    %v2784 = vsub.s32 0, %v2783
    %v2785 = vrot.slane %v2780, %v2784
    %v2787 = vadd.f32 %v2779, %v2785
    %vm2788 = vcmask 15360
    %2789 = vst.msk [vmem:[%s9] sm:$0xff] %vm2788, %v2787
    // Predicated region
    $region54: #{tpu_custom_call.1} parent=1 // pred_check
      _
    $region55: #{tpu_custom_call.1} parent=1 // pred_check_branch
      %2791 = sbr.rel (0) target = $region57
    $region56: #{tpu_custom_call.1} parent=1 // pred_region
      _
    $region57: #{tpu_custom_call.1} parent=1 // pred_fallthru
      _
    // Predicated region
    $region58: #{tpu_custom_call.1} parent=1 // pred_check
      _
    $region59: #{tpu_custom_call.1} parent=1 // pred_check_branch
      %2793 = sbr.rel (0) target = $region61
    $region60: #{tpu_custom_call.1} parent=1 // pred_region
      _
    $region61: #{tpu_custom_call.1} parent=1 // pred_fallthru
      _
    %2794 = vsyncpa [#allocation3], 1
    %2795 = vsyncpa [#allocation5], 1
    %2796 = vsyncpa [#allocation8], 1

</llo_original>
